<compile_context>
chip_gen: v5e
topology: v5e:2x2
jax: 0.10.0
libtpu: 0.0.40
codegen_flags: <defaults>
</compile_context>

<pallas_src>
import math

import jax
import jax.numpy as jnp
from jax import lax
from jax.experimental import pallas as pl
from jax.experimental.pallas import tpu as pltpu


# ----------------------------- Pallas kernel ------------------------------ #
def _down_conv_kernel(x_ref, w_ref, b_ref, o_ref):
    """One (batch, row-tile) block of the stride-2 4x4 conv.

    x_ref : (1, t+1, Wo+1, 4*C)  bf16  parity-folded padded input slab,
                                       lane (pr*2+pc)*C + c holds
                                       x_pad[2*i + pr, 2*j + pc, c]
    w_ref : (16*C, Cout)         bf16  weight, rows ordered (sr, sc, pr, pc, c)
    b_ref : (1, Cout)            f32   bias
    o_ref : (1, t*Wo, Cout)            output tile (row-major over (t, Wo))
    """
    t = x_ref.shape[1] - 1
    wo = x_ref.shape[2] - 1
    c4 = x_ref.shape[-1]
    m = o_ref.shape[1]                      # = t * wo

    acc = None
    for j, (sr, sc) in enumerate(((0, 0), (0, 1), (1, 0), (1, 1))):
        # Full-lane-width window: covers the 4 taps (kh, kw) = (2*sr+pr, 2*sc+pc)
        # for pr, pc in {0,1}.  Collapsing (t, Wo) keeps the minor dim (4C)
        # intact, so it is a layout-friendly reshape.
        a = x_ref[0, sr:sr + t, sc:sc + wo, :].reshape(m, c4)     # (t*Wo, 4C) bf16
        wj = w_ref[j * c4:(j + 1) * c4, :]                        # (4C, Cout) bf16
        p = jnp.dot(a, wj, preferred_element_type=jnp.float32)    # MXU, f32 acc
        acc = p if acc is None else acc + p
    o_ref[0] = (acc + b_ref[...]).astype(o_ref.dtype)             # one store / tile


def _pallas_downsample_conv(x_blocks, w_mat, b_row, t, Wo, out_dtype, vmem_limit):
    G, Th, Wp, C4 = x_blocks.shape
    K, N = w_mat.shape
    M = t * Wo
    cost = pl.CostEstimate(
        flops=2 * G * M * K * N,
        transcendentals=0,
        bytes_accessed=int(x_blocks.size * x_blocks.dtype.itemsize
                           + w_mat.size * w_mat.dtype.itemsize
                           + b_row.size * b_row.dtype.itemsize
                           + G * M * N * jnp.dtype(out_dtype).itemsize))
    return pl.pallas_call(
        _down_conv_kernel,
        out_shape=jax.ShapeDtypeStruct((G, M, N), out_dtype),
        grid_spec=pltpu.PrefetchScalarGridSpec(
            num_scalar_prefetch=0,
            grid=(G,),
            in_specs=[
                pl.BlockSpec((1, Th, Wp, C4), lambda g: (g, 0, 0, 0)),
                # TODO(synk): single-buffer the grid-invariant weight/bias
                # (pipeline_mode=pl.Buffered(1)); their double-buffering is
                # conservatively charged in the VMEM budget instead.
                pl.BlockSpec((K, N), lambda g: (0, 0)),
                pl.BlockSpec((1, N), lambda g: (0, 0)),
            ],
            out_specs=pl.BlockSpec((1, M, N), lambda g: (g, 0, 0)),
        ),
        compiler_params=pltpu.CompilerParams(
            dimension_semantics=("parallel",),
            vmem_limit_bytes=int(vmem_limit)),
        cost_estimate=cost,
    )(x_blocks, w_mat, b_row)


# ------------------------------ host glue ---------------------------------- #
def _round_up(v, m):
    return ((v + m - 1) // m) * m


def _vmem_block_bytes(shape, itemsize, sublane):
    """VMEM footprint of one block, incl. (sublane, 128-lane) layout padding."""
    lead = 1
    for d in shape[:-2]:
        lead *= d
    return lead * _round_up(shape[-2], sublane) * _round_up(shape[-1], 128) * itemsize


def _vmem_budget():
    """(vmem_limit_bytes, per-kernel buffer budget), generation-aware."""
    try:
        cap = int(pltpu.get_tpu_info().vmem_capacity_bytes)   # 128 MiB v5e/v6e, 64 MiB v7x
    except Exception:
        cap = 64 * 1024 * 1024                                # conservative (v7x per-TC)
    cap = max(cap, 32 * 1024 * 1024)
    limit = cap * 3 // 4           # ~96 MiB on 128 MiB chips, ~48 MiB on v7x
    budget = limit * 4 // 5        # headroom for Mosaic internal scratch
    return limit, budget


def _pick_row_tile(B, Ho, Wo, C, Cout, budget):
    """Output-row tile t, chosen from the VMEM budget (no hard-coded 8 MiB)."""
    C4, K = 4 * C, 16 * C
    Wp = Wo + 1

    def fits(t):
        inp = 2 * _vmem_block_bytes((1, t + 1, Wp, C4), 2, 16)   # bf16, double-buffered
        out = 2 * _vmem_block_bytes((1, t * Wo, Cout), 4, 8)     # f32, double-buffered
        wgt = 2 * (_vmem_block_bytes((K, Cout), 2, 16)           # weight + bias,
                   + _vmem_block_bytes((1, Cout), 4, 8))         # charged double-buffered
        return inp + out + wgt <= budget

    t_max = 1
    for t in range(1, Ho + 1):
        if fits(t):
            t_max = t
        else:
            break

    # Candidates: divisors of Ho (no tail) plus the budget-max tile (tail is
    # zero-padded), so awkward/prime Ho does not degenerate to t=1.
    cands = sorted({t for t in range(1, t_max + 1) if Ho % t == 0} | {t_max})

    def score(t):
        steps = -(-Ho // t)
        g = B * steps
        return (g >= 2,          # keep both v7x TensorCores busy
                -steps,          # fewer grid steps, bigger M per matmul
                Ho % t == 0,     # avoid the tail-slice pass
                g % 2 == 0)      # balanced across the two v7x cores

    return max(cands, key=score)


def _build_folded_slabs(x_img, t, n_r):
    """(B, H, W, C) -> (B*n_r, t+1, Wo+1, 4*C) bf16 parity-folded row-tile slabs.

    Pads spatially by 1 and folds (row parity, col parity) into the lane axis,
    so every stride-2 4x4 tap window is a full-lane-width contiguous slice in
    the kernel (one halo row per row tile).
    """
    B, H, W, C = x_img.shape
    Ho, Wo = H // 2, W // 2
    Hp, Wp = Ho + 1, Wo + 1
    xb = x_img.astype(jnp.bfloat16)            # half-size relayout + kernel read
    xp = jnp.pad(xb, ((0, 0), (1, 1), (1, 1), (0, 0)))
    y = xp.reshape(B, Hp, 2, Wp, 2, C)                      # (b, i, pr, j, pc, c)
    y = jnp.transpose(y, (0, 1, 3, 2, 4, 5)).reshape(B, Hp, Wp, 4 * C)
    rows_needed = n_r * t + 1
    if rows_needed > Hp:                                    # tail tile (non-divisor t)
        y = jnp.pad(y, ((0, 0), (0, rows_needed - Hp), (0, 0), (0, 0)))
    slabs = [y[:, r * t: r * t + t + 1] for r in range(n_r)]
    yb = jnp.stack(slabs, axis=1)                           # (B, n_r, t+1, Wp, 4C)
    return yb.reshape(B * n_r, t + 1, Wp, 4 * C)


# ------------------------------ Downsample -------------------------------- #
class Downsample:
    """JAX/Pallas port of the PyTorch Downsample module (Conv2d k=4, s=2, p=1)."""

    def __init__(self, in_channel, out_channel, key):
        self.in_channel = in_channel
        self.out_channel = out_channel
        k_w, k_b = jax.random.split(key)
        fan_in = in_channel * 4 * 4
        bound = 1.0 / math.sqrt(fan_in)
        # Deterministic init mimicking PyTorch Conv2d default (uniform).
        self.weight = jax.random.uniform(
            k_w, (out_channel, in_channel, 4, 4),
            minval=-bound, maxval=bound, dtype=jnp.float32)
        self.bias = jax.random.uniform(
            k_b, (out_channel,), minval=-bound, maxval=bound, dtype=jnp.float32)

    def __call__(self, x):
        B, L, C = x.shape
        H = int(round(math.sqrt(L)))
        assert H * H == L, "Downsample expects a square token grid"
        W = H
        assert C == self.in_channel
        assert H % 2 == 0 and W % 2 == 0, "stride-2 conv expects even H, W"
        Ho, Wo = H // 2, W // 2
        Cout = self.out_channel

        vmem_limit, budget = _vmem_budget()
        t = _pick_row_tile(B, Ho, Wo, C, Cout, budget)
        n_r = -(-Ho // t)

        # host glue (~1x bf16 relayout): pad + parity fold + row tiling
        # TODO(synk): replace with in-kernel strided DMAs (pl.ANY +
        # pltpu.make_async_copy) to remove this extra input pass entirely.
        x_img = x.reshape(B, H, W, C)
        x_blocks = _build_folded_slabs(x_img, t, n_r)      # (B*n_r, t+1, Wo+1, 4C)

        # weight (Cout, Cin, 4, 4) -> rows ordered (sr, sc, pr, pc, c_in), bf16
        w6 = self.weight.reshape(Cout, C, 2, 2, 2, 2)      # (o, c, sr, pr, sc, pc)
        w_mat = jnp.transpose(w6, (2, 4, 3, 5, 1, 0)).reshape(16 * C, Cout)
        w_mat = w_mat.astype(jnp.bfloat16)
        b_row = self.bias.reshape(1, Cout).astype(jnp.float32)

        # hot path: fused window-gather + 4 accumulated MXU matmuls + bias
        out3 = _pallas_downsample_conv(
            x_blocks, w_mat, b_row, t, Wo, x.dtype, vmem_limit)  # (B*n_r, t*Wo, Cout)

        if n_r * t == Ho:                                  # common case: no extra pass
            return out3.reshape(B, Ho * Wo, Cout)
        out = out3.reshape(B, n_r * t, Wo, Cout)[:, :Ho]   # drop padded tail rows
        return out.reshape(B, Ho * Wo, Cout)


# ------------------------------ reference ---------------------------------- #
def _reference_forward(x, weight, bias):
    """Pure-JAX reference matching the PyTorch forward exactly (NCHW conv)."""
    B, L, C = x.shape
    H = W = int(round(math.sqrt(L)))
    x_nchw = jnp.transpose(x, (0, 2, 1)).reshape(B, C, H, W)
    y = lax.conv_general_dilated(
        x_nchw, weight, window_strides=(2, 2),
        padding=((1, 1), (1, 1)),
        dimension_numbers=("NCHW", "OIHW", "NCHW"),
        precision=lax.Precision.HIGHEST)
    y = y + bias.reshape(1, -1, 1, 1)
    B_, Co, Ho, Wo = y.shape
    return jnp.transpose(y.reshape(B_, Co, Ho * Wo), (0, 2, 1))


# --------------------------------- main ------------------------------------ #
if __name__ == "__main__":
    key = jax.random.PRNGKey(0)
    k_param, k_x = jax.random.split(key)

    B, H, W = 2, 32, 32
    C_in, C_out = 4, 8
    L = H * W

    module = Downsample(C_in, C_out, k_param)
    x = jax.random.normal(k_x, (B, L, C_in), dtype=jnp.float32)

    fwd = jax.jit(lambda xx: module(xx))
    out = jax.block_until_ready(fwd(x))
    assert out.shape == (B, (H // 2) * (W // 2), C_out), out.shape

    # Reference applies the same bf16 rounding the kernel uses for its matmul
    # operands (accumulation stays f32 in both) -> a tight tolerance is valid.
    x_bf = x.astype(jnp.bfloat16).astype(jnp.float32)
    w_bf = module.weight.astype(jnp.bfloat16).astype(jnp.float32)
    ref = _reference_forward(x_bf, w_bf, module.bias)
    max_err = float(jnp.max(jnp.abs(out - ref)))
    assert jnp.allclose(out, ref, atol=2e-3, rtol=2e-3), max_err

    print("KERNEL_OK")
</pallas_src>

<mosaic_0001>
module attributes {stable_mosaic.version = 11 : i64} {
  func.func @_down_conv_kernel(%arg0: i32, %arg1: memref<1x17x17x16xbf16, #tpu.memory_space<vmem>>, %arg2: memref<64x8xbf16, #tpu.memory_space<vmem>>, %arg3: memref<1x8xf32, #tpu.memory_space<vmem>>, %arg4: memref<1x256x8xf32, #tpu.memory_space<vmem>>) attributes {dimension_semantics = [#tpu.dimension_semantics<parallel>], iteration_bounds = array<i64: 2>, scalar_prefetch = 0 : i64, scratch_operands = 0 : i64, tpu.core_type = #tpu.core_type<tc>, window_params = [{transform_indices = @transform_0, window_bounds = array<i64: 1, 17, 17, 16>}, {pipeline_mode = #tpu.pipeline_mode<synchronous>, transform_indices = @transform_1, window_bounds = array<i64: 64, 8>}, {pipeline_mode = #tpu.pipeline_mode<synchronous>, transform_indices = @transform_2, window_bounds = array<i64: 1, 8>}, {transform_indices = @transform_3, window_bounds = array<i64: 1, 256, 8>}]} {
    %c0 = arith.constant 0 : index
    %c0_0 = arith.constant 0 : index
    %c0_1 = arith.constant 0 : index
    %c0_2 = arith.constant 0 : index
    %0 = vector.load %arg1[%c0, %c0_0, %c0_1, %c0_2] : memref<1x17x17x16xbf16, #tpu.memory_space<vmem>>, vector<1x16x16x16xbf16>
    %1 = vector.shape_cast %0 : vector<1x16x16x16xbf16> to vector<16x16x16xbf16>
    %2 = vector.shape_cast %1 : vector<16x16x16xbf16> to vector<256x16xbf16>
    %c0_3 = arith.constant 0 : index
    %c0_4 = arith.constant 0 : index
    %3 = vector.load %arg2[%c0_3, %c0_4] : memref<64x8xbf16, #tpu.memory_space<vmem>>, vector<16x8xbf16>
    %cst = arith.constant dense<0.000000e+00> : vector<256x8xf32>
    %4 = tpu.matmul %2, %3, %cst {dimension_numbers = #tpu.dot_dimension_numbers<[1], [0], [0], [1], [0, 0, 1, 1], [], []>} : vector<256x16xbf16>, vector<16x8xbf16>, vector<256x8xf32> -> vector<256x8xf32>
    %c0_5 = arith.constant 0 : index
    %c0_6 = arith.constant 0 : index
    %c1 = arith.constant 1 : index
    %c0_7 = arith.constant 0 : index
    %5 = vector.load %arg1[%c0_5, %c0_6, %c1, %c0_7] : memref<1x17x17x16xbf16, #tpu.memory_space<vmem>>, vector<1x16x16x16xbf16>
    %6 = vector.shape_cast %5 : vector<1x16x16x16xbf16> to vector<16x16x16xbf16>
    %7 = vector.shape_cast %6 : vector<16x16x16xbf16> to vector<256x16xbf16>
    %c16 = arith.constant 16 : index
    %c0_8 = arith.constant 0 : index
    %8 = vector.load %arg2[%c16, %c0_8] : memref<64x8xbf16, #tpu.memory_space<vmem>>, vector<16x8xbf16>
    %cst_9 = arith.constant dense<0.000000e+00> : vector<256x8xf32>
    %9 = tpu.matmul %7, %8, %cst_9 {dimension_numbers = #tpu.dot_dimension_numbers<[1], [0], [0], [1], [0, 0, 1, 1], [], []>} : vector<256x16xbf16>, vector<16x8xbf16>, vector<256x8xf32> -> vector<256x8xf32>
    %10 = arith.addf %4, %9 : vector<256x8xf32>
    %c0_10 = arith.constant 0 : index
    %c1_11 = arith.constant 1 : index
    %c0_12 = arith.constant 0 : index
    %c0_13 = arith.constant 0 : index
    %11 = vector.load %arg1[%c0_10, %c1_11, %c0_12, %c0_13] : memref<1x17x17x16xbf16, #tpu.memory_space<vmem>>, vector<1x16x16x16xbf16>
    %12 = vector.shape_cast %11 : vector<1x16x16x16xbf16> to vector<16x16x16xbf16>
    %13 = vector.shape_cast %12 : vector<16x16x16xbf16> to vector<256x16xbf16>
    %c32 = arith.constant 32 : index
    %c0_14 = arith.constant 0 : index
    %14 = vector.load %arg2[%c32, %c0_14] : memref<64x8xbf16, #tpu.memory_space<vmem>>, vector<16x8xbf16>
    %cst_15 = arith.constant dense<0.000000e+00> : vector<256x8xf32>
    %15 = tpu.matmul %13, %14, %cst_15 {dimension_numbers = #tpu.dot_dimension_numbers<[1], [0], [0], [1], [0, 0, 1, 1], [], []>} : vector<256x16xbf16>, vector<16x8xbf16>, vector<256x8xf32> -> vector<256x8xf32>
    %16 = arith.addf %10, %15 : vector<256x8xf32>
    %c0_16 = arith.constant 0 : index
    %c1_17 = arith.constant 1 : index
    %c1_18 = arith.constant 1 : index
    %c0_19 = arith.constant 0 : index
    %17 = vector.load %arg1[%c0_16, %c1_17, %c1_18, %c0_19] : memref<1x17x17x16xbf16, #tpu.memory_space<vmem>>, vector<1x16x16x16xbf16>
    %18 = vector.shape_cast %17 : vector<1x16x16x16xbf16> to vector<16x16x16xbf16>
    %19 = vector.shape_cast %18 : vector<16x16x16xbf16> to vector<256x16xbf16>
    %c48 = arith.constant 48 : index
    %c0_20 = arith.constant 0 : index
    %20 = vector.load %arg2[%c48, %c0_20] : memref<64x8xbf16, #tpu.memory_space<vmem>>, vector<16x8xbf16>
    %cst_21 = arith.constant dense<0.000000e+00> : vector<256x8xf32>
    %21 = tpu.matmul %19, %20, %cst_21 {dimension_numbers = #tpu.dot_dimension_numbers<[1], [0], [0], [1], [0, 0, 1, 1], [], []>} : vector<256x16xbf16>, vector<16x8xbf16>, vector<256x8xf32> -> vector<256x8xf32>
    %22 = arith.addf %16, %21 : vector<256x8xf32>
    %c0_22 = arith.constant 0 : index
    %c0_23 = arith.constant 0 : index
    %23 = vector.load %arg3[%c0_22, %c0_23] : memref<1x8xf32, #tpu.memory_space<vmem>>, vector<1x8xf32>
    %24 = vector.broadcast %23 : vector<1x8xf32> to vector<256x8xf32>
    %25 = arith.addf %22, %24 : vector<256x8xf32>
    %c0_24 = arith.constant 0 : index
    %c0_25 = arith.constant 0 : index
    %c0_26 = arith.constant 0 : index
    %26 = vector.load %arg4[%c0_24, %c0_25, %c0_26] : memref<1x256x8xf32, #tpu.memory_space<vmem>>, vector<1x256x8xf32>
    %27 = vector.shape_cast %26 : vector<1x256x8xf32> to vector<256x8xf32>
    %28 = vector.shape_cast %25 : vector<256x8xf32> to vector<1x256x8xf32>
    tpu.vector_store %arg4[%c0_24, %c0_25, %c0_26], %28 {strides = array<i32>} : memref<1x256x8xf32, #tpu.memory_space<vmem>>, vector<1x256x8xf32>,
    return
  }
  func.func @transform_0(%arg0: i32) -> (i32, i32, i32, i32) {
    %c0_i32 = arith.constant 0 : i32
    %c0_i32_0 = arith.constant 0 : i32
    %c0_i32_1 = arith.constant 0 : i32
    %c0_i32_2 = arith.constant 0 : i32
    return %arg0, %c0_i32, %c0_i32_0, %c0_i32_1 : i32, i32, i32, i32
  }
  func.func @transform_1(%arg0: i32) -> (i32, i32) {
    %c0_i32 = arith.constant 0 : i32
    %c0_i32_0 = arith.constant 0 : i32
    %c0_i32_1 = arith.constant 0 : i32
    return %c0_i32, %c0_i32_0 : i32, i32
  }
  func.func @transform_2(%arg0: i32) -> (i32, i32) {
    %c0_i32 = arith.constant 0 : i32
    %c0_i32_0 = arith.constant 0 : i32
    %c0_i32_1 = arith.constant 0 : i32
    return %c0_i32, %c0_i32_0 : i32, i32
  }
  func.func @transform_3(%arg0: i32) -> (i32, i32, i32) {
    %c0_i32 = arith.constant 0 : i32
    %c0_i32_0 = arith.constant 0 : i32
    %c0_i32_1 = arith.constant 0 : i32
    return %arg0, %c0_i32, %c0_i32_0 : i32, i32, i32
  }
}

</mosaic_0001>

<llo_original>
// kernel: _lambda_.1
$region0: #{_lambda_.1}
  #allocation0 [shape = 'u32[]', space=smem, size = 0x4, offset = 0x4, fixed_abs, tag = 'smem constant byte address 0x4 - core index']
  #allocation1 [shape = 'u32[72,128]{1,0:T(1,128)}', space=vmem, size = 0x9000, scoped, tag = 'internal scratch']
  %s0 = inlined_call_operand.vmem [shape: bf16[2,17,17,16], index: 0, kind: input, shape index: {}]
  %s1 = inlined_call_operand.vmem [shape: bf16[64,8], index: 1, kind: input, shape index: {}]
  %s2 = inlined_call_operand.vmem [shape: f32[1,8], index: 2, kind: input, shape index: {}]
  %s3 = inlined_call_operand.vmem [shape: f32[2,256,8], index: 3, kind: output, shape index: {}]
  %s4 = sld [smem:[#allocation0]]
  $region45: #{_lambda_.1} parent=0
    _
  %s6 = ssub.s32 1, %s4
  %s7 = scalar_select 0, %s6, %s4
  loop: start=0, step=1, limit=4
  $region2: #{_lambda_.1} parent=0 // loop_pre_header
    _
  $region3: #{_lambda_.1} parent=0 // loop_header
    %s9 = sphi 0, %s13
    %p10 = scmp.ge.s32.totalorder %s9, 4
    %s19 = sphi 0, %s21
    %s22 = sphi 0, %s19
    %s23 = sphi 0, %s22
    %s39 = sphi 0, %s23
    %s43 = sphi 0, %s43
    %s45 = sphi 0, %s43
    %s46 = sphi 0, %s45
    %s60 = sphi 0, %s46
    %s64 = sphi 0, %s64
    %s66 = sphi 0, %s64
    %s67 = sphi 0, %s66
    %s81 = sphi 0, %s67
    %s87 = sphi 0, %s89
    %s90 = sphi 0, %s87
    %s91 = sphi 0, %s90
    %s107 = sphi 0, %s91
  $region4: #{_lambda_.1} parent=0 // loop_header_branch
    %12 = sbr.rel (%p10) target = $region8
  $region5: #{_lambda_.1} parent=0 // loop_body
    %s14 = ssub.s32 %s9, 1
    %s15 = ssub.s32 %s9, 2
    %s16 = sadd.s32 %s9, 1
    %s17 = ssub.s32 %s9, %s16
    %p18 = scmp.eq.s32.totalorder %s17, 0
    %s20 = sadd.s32 %s19, 1
    %s21 = scalar_select %p18, %s19, %s20
    %p24 = pneg %p18
    %p25 = scmp.eq.s32.totalorder %s9, 1
    %p26 = por %p24, %p25
    %p27 = scmp.ne.s32.totalorder %s19, %s22
    %p28 = scmp.eq.s32.totalorder %s9, 0
    %p29 = por %p27, %p28
    %p30 = scmp.ne.s32.totalorder %s19, %s22
    %p31 = scmp.eq.s32.totalorder %s14, 1
    %p32 = por %p30, %p31
    %p33 = scmp.ne.s32.totalorder %s22, %s23
    %p34 = scmp.eq.s32.totalorder %s14, 0
    %p35 = por %p33, %p34
    %p36 = scmp.ne.s32.totalorder %s22, %s23
    %p37 = scmp.eq.s32.totalorder %s15, 1
    %p38 = por %p36, %p37
    %p40 = scmp.ne.s32.totalorder %s23, %s39
    %p41 = scmp.eq.s32.totalorder %s15, 0
    %p42 = por %p40, %p41
    %s44 = sadd.s32 %s43, 1
    %p47 = scmp.eq.s32.totalorder %s9, 1
    %p48 = scmp.ne.s32.totalorder %s43, %s45
    %p49 = scmp.eq.s32.totalorder %s9, 0
    %p50 = por %p48, %p49
    %p51 = scmp.ne.s32.totalorder %s43, %s45
    %p52 = scmp.eq.s32.totalorder %s14, 1
    %p53 = por %p51, %p52
    %p54 = scmp.ne.s32.totalorder %s45, %s46
    %p55 = scmp.eq.s32.totalorder %s14, 0
    %p56 = por %p54, %p55
    %p57 = scmp.ne.s32.totalorder %s45, %s46
    %p58 = scmp.eq.s32.totalorder %s15, 1
    %p59 = por %p57, %p58
    %p61 = scmp.ne.s32.totalorder %s46, %s60
    %p62 = scmp.eq.s32.totalorder %s15, 0
    %p63 = por %p61, %p62
    %s65 = sadd.s32 %s64, 1
    %p68 = scmp.eq.s32.totalorder %s9, 1
    %p69 = scmp.ne.s32.totalorder %s64, %s66
    %p70 = scmp.eq.s32.totalorder %s9, 0
    %p71 = por %p69, %p70
    %p72 = scmp.ne.s32.totalorder %s64, %s66
    %p73 = scmp.eq.s32.totalorder %s14, 1
    %p74 = por %p72, %p73
    %p75 = scmp.ne.s32.totalorder %s66, %s67
    %p76 = scmp.eq.s32.totalorder %s14, 0
    %p77 = por %p75, %p76
    %p78 = scmp.ne.s32.totalorder %s66, %s67
    %p79 = scmp.eq.s32.totalorder %s15, 1
    %p80 = por %p78, %p79
    %p82 = scmp.ne.s32.totalorder %s67, %s81
    %p83 = scmp.eq.s32.totalorder %s15, 0
    %p84 = por %p82, %p83
    %s85 = ssub.s32 %s9, %s16
    %p86 = scmp.eq.s32.totalorder %s85, 0
    %s88 = sadd.s32 %s87, 1
    %s89 = scalar_select %p86, %s87, %s88
    %p92 = pneg %p86
    %p93 = scmp.eq.s32.totalorder %s9, 1
    %p94 = por %p92, %p93
    %p95 = scmp.ne.s32.totalorder %s87, %s90
    %p96 = scmp.eq.s32.totalorder %s9, 0
    %p97 = por %p95, %p96
    %p98 = scmp.ne.s32.totalorder %s87, %s90
    %p99 = scmp.eq.s32.totalorder %s14, 1
    %p100 = por %p98, %p99
    %p101 = scmp.ne.s32.totalorder %s90, %s91
    %p102 = scmp.eq.s32.totalorder %s14, 0
    %p103 = por %p101, %p102
    %p104 = scmp.ne.s32.totalorder %s90, %s91
    %p105 = scmp.eq.s32.totalorder %s15, 1
    %p106 = por %p104, %p105
    %p108 = scmp.ne.s32.totalorder %s91, %s107
    %p109 = scmp.eq.s32.totalorder %s15, 0
    %p110 = por %p108, %p109
    %p111 = scmp.le.s32.totalorder 1, %s9
    %p112 = scmp.lt.s32.totalorder %s9, 3
    %p113 = pnand %p111, %p112
    %p114 = pneg %p113
    // Predicated region
    $region9: #{_lambda_.1} parent=5 // pred_check
      _
    $region10: #{_lambda_.1} parent=5 // pred_check_branch
      %116 = sbr.rel (%p113) target = $region12
    $region11: #{_lambda_.1} parent=5 // pred_region
      %s117 = ssub.s32 %s9, 1
      // Predicated region
      $region13: #{_lambda_.1} parent=11 // pred_check
        %p118 = pneg %p56
      $region14: #{_lambda_.1} parent=11 // pred_check_branch
        %120 = sbr.rel (%p118) target = $region16
      $region15: #{_lambda_.1} parent=11 // pred_region
        _
      $region16: #{_lambda_.1} parent=11 // pred_fallthru
        _
      // Predicated region
      $region17: #{_lambda_.1} parent=11 // pred_check
        %p121 = pneg %p77
      $region18: #{_lambda_.1} parent=11 // pred_check_branch
        %123 = sbr.rel (%p121) target = $region20
      $region19: #{_lambda_.1} parent=11 // pred_region
        _
      $region20: #{_lambda_.1} parent=11 // pred_fallthru
        _
    $region12: #{_lambda_.1} parent=5 // pred_fallthru
      _
    %p124 = scmp.lt.s32.totalorder %s9, 2
    // Predicated region
    $region21: #{_lambda_.1} parent=5 // pred_check
      %p125 = pneg %p124
    $region22: #{_lambda_.1} parent=5 // pred_check_branch
      %127 = sbr.rel (%p125) target = $region24
    $region23: #{_lambda_.1} parent=5 // pred_region
      // Predicated region
      $region25: #{_lambda_.1} parent=23 // pred_check
        %p128 = pneg %p29
      $region26: #{_lambda_.1} parent=23 // pred_check_branch
        %130 = sbr.rel (%p128) target = $region28
      $region27: #{_lambda_.1} parent=23 // pred_region
        %p131 = scmp.lt.s32.totalorder %s9, 1
        %s132 = scalar_select %p131, %s9, 1
        %s133 = smul.addr %s132, 51
        %s134 = smul.addr %s133, 4
        %s135 = scalar_lea.vmem %s0, %s134
      $region28: #{_lambda_.1} parent=23 // pred_fallthru
        _
    $region24: #{_lambda_.1} parent=5 // pred_fallthru
      _
    %p136 = scmp.le.s32.totalorder 1, %s9
    %p137 = scmp.lt.s32.totalorder %s9, 3
    %p138 = pnand %p136, %p137
    %p139 = pneg %p138
    // Predicated region
    $region29: #{_lambda_.1} parent=5 // pred_check
      _
    $region30: #{_lambda_.1} parent=5 // pred_check_branch
      %141 = sbr.rel (%p138) target = $region32
    $region31: #{_lambda_.1} parent=5 // pred_region
      %s142 = ssub.s32 %s9, 1
      %p143 = scmp.lt.s32.totalorder %s14, 1
      %s144 = scalar_select %p143, %s14, 1
      %s145 = smul.addr %s144, 51
      %s146 = smul.addr %s145, 4
      %s147 = scalar_lea.vmem %s0, %s146
      %p148 = pneg %p35
      %p149 = pneg %p32
      %p150 = pneg %p56
      %p151 = pneg %p53
      %p152 = pneg %p77
      %p153 = pneg %p74
      %p154 = pneg %p103
      %p155 = pneg %p100
      %p156 = scmp.lt.s32.totalorder %s14, 1
      %s157 = scalar_select %p156, %s14, 1
      %s158 = smul.addr %s157, 32
      %s159 = smul.addr %s158, 8
      %s160 = scalar_lea.vmem %s3, %s159
      %p161 = scmp.lt.s32.totalorder %s14, 1
      %s162 = scalar_select %p161, %s14, 1
      %s163 = smul.addr %s162, 51
      %s164 = smul.addr %s163, 4
      %s165 = scalar_lea.vmem %s0, %s164
      %p166 = scmp.lt.s32.totalorder %s14, 1
      %s167 = scalar_select %p166, %s14, 1
      %s168 = smul.addr %s167, 32
      %s169 = smul.addr %s168, 8
      %s170 = scalar_lea.vmem %s3, %s169
      %v172 = vld [vmem:[%s165] sm:$0xf]
      %v173 = vld [vmem:[%s165 + $0x4] sm:$0xf]
      %v174 = vld [vmem:[%s165 + $0xc] sm:$0xf]
      %v175 = vld [vmem:[%s165 + $0x10] sm:$0xf]
      %v176 = vld [vmem:[%s165 + $0x18] sm:$0xf]
      %v177 = vld [vmem:[%s165 + $0x1c] sm:$0xf]
      %v178 = vld [vmem:[%s165 + $0x24] sm:$0xf]
      %v179 = vld [vmem:[%s165 + $0x28] sm:$0xf]
      %v180 = vld [vmem:[%s165 + $0x30] sm:$0xf]
      %v181 = vld [vmem:[%s165 + $0x34] sm:$0xf]
      %v182 = vld [vmem:[%s165 + $0x3c] sm:$0xf]
      %v183 = vld [vmem:[%s165 + $0x40] sm:$0xf]
      %v184 = vld [vmem:[%s165 + $0x48] sm:$0xf]
      %v185 = vld [vmem:[%s165 + $0x4c] sm:$0xf]
      %v186 = vld [vmem:[%s165 + $0x54] sm:$0xf]
      %v187 = vld [vmem:[%s165 + $0x58] sm:$0xf]
      %v188 = vld [vmem:[%s165 + $0x60] sm:$0xf]
      %v189 = vld [vmem:[%s165 + $0x64] sm:$0xf]
      %v190 = vld [vmem:[%s165 + $0x6c] sm:$0xf]
      %v191 = vld [vmem:[%s165 + $0x70] sm:$0xf]
      %v192 = vld [vmem:[%s165 + $0x78] sm:$0xf]
      %v193 = vld [vmem:[%s165 + $0x7c] sm:$0xf]
      %v194 = vld [vmem:[%s165 + $0x84] sm:$0xf]
      %v195 = vld [vmem:[%s165 + $0x88] sm:$0xf]
      %v196 = vld [vmem:[%s165 + $0x90] sm:$0xf]
      %v197 = vld [vmem:[%s165 + $0x94] sm:$0xf]
      %v198 = vld [vmem:[%s165 + $0x9c] sm:$0xf]
      %v199 = vld [vmem:[%s165 + $0xa0] sm:$0xf]
      %v200 = vld [vmem:[%s165 + $0xa8] sm:$0xf]
      %v201 = vld [vmem:[%s165 + $0xac] sm:$0xf]
      %v202 = vld [vmem:[%s165 + $0xb4] sm:$0xf]
      %v203 = vld [vmem:[%s165 + $0xb8] sm:$0xf]
      %v204 = vld [vmem:[%s1] sm:$0xf]
      %v205 = vld [vmem:[%s1 + $0x4] sm:$0xf]
      %v206 = vld [vmem:[%s165 + $0x8] sm:$0x1]
      %v207 = vld [vmem:[%s165 + $0x14] sm:$0x1]
      %v208 = vld [vmem:[%s165 + $0x20] sm:$0x1]
      %v209 = vld [vmem:[%s165 + $0x2c] sm:$0x1]
      %v210 = vld [vmem:[%s165 + $0x38] sm:$0x1]
      %v211 = vld [vmem:[%s165 + $0x44] sm:$0x1]
      %v212 = vld [vmem:[%s165 + $0x50] sm:$0x1]
      %v213 = vld [vmem:[%s165 + $0x5c] sm:$0x1]
      %v214 = vld [vmem:[%s165 + $0x68] sm:$0x1]
      %v215 = vld [vmem:[%s165 + $0x74] sm:$0x1]
      %v216 = vld [vmem:[%s165 + $0x80] sm:$0x1]
      %v217 = vld [vmem:[%s165 + $0x8c] sm:$0x1]
      %v218 = vld [vmem:[%s165 + $0x98] sm:$0x1]
      %v219 = vld [vmem:[%s165 + $0xa4] sm:$0x1]
      %v220 = vld [vmem:[%s165 + $0xb0] sm:$0x1]
      %v221 = vld [vmem:[%s165 + $0xbc] sm:$0x1]
      %vm222 = vsmask.f32 3328
      %vm223 = vsmask.f32 7440
      %vm224 = vmor %vm222, %vm223
      %v226 = vshrl.u32 %v172, 16
      %v228 = vrot.slane %v226, 4
      %v229 = vshll.u32 %v172, 16
      %v231 = vrot.slane %v229, 5
      %v232 = vor.u32 %v228, %v231
      %v233 = vrot.slane %v232, 4
      %v235 = vshll.u32 %v173, 16
      %v237 = vrot.slane %v235, 5
      %v238 = vsel %vm224, %v233, %v237
      %v239 = vshrl.u32 %v173, 16
      %v241 = vrot.slane %v239, 4
      %v242 = vor.u32 %v241, %v237
      %v243 = vrot.slane %v242, 4
      %v245 = vshll.u32 %v206, 16
      %v247 = vrot.slane %v245, 5
      %v248 = vsel %vm224, %v243, %v247
      %v250 = vshrl.u32 %v174, 16
      %v252 = vrot.slane %v250, 4
      %v253 = vshll.u32 %v174, 16
      %v255 = vrot.slane %v253, 5
      %v256 = vor.u32 %v252, %v255
      %v257 = vrot.slane %v256, 4
      %v259 = vshll.u32 %v175, 16
      %v261 = vrot.slane %v259, 5
      %v262 = vsel %vm224, %v257, %v261
      %v263 = vshrl.u32 %v175, 16
      %v265 = vrot.slane %v263, 4
      %v266 = vor.u32 %v265, %v261
      %v267 = vrot.slane %v266, 4
      %v269 = vshll.u32 %v207, 16
      %v271 = vrot.slane %v269, 5
      %v272 = vsel %vm224, %v267, %v271
      %v274 = vshrl.u32 %v176, 16
      %v276 = vrot.slane %v274, 4
      %v277 = vshll.u32 %v176, 16
      %v279 = vrot.slane %v277, 5
      %v280 = vor.u32 %v276, %v279
      %v281 = vrot.slane %v280, 4
      %v283 = vshll.u32 %v177, 16
      %v285 = vrot.slane %v283, 5
      %v286 = vsel %vm224, %v281, %v285
      %v287 = vshrl.u32 %v177, 16
      %v289 = vrot.slane %v287, 4
      %v290 = vor.u32 %v289, %v285
      %v291 = vrot.slane %v290, 4
      %v293 = vshll.u32 %v208, 16
      %v295 = vrot.slane %v293, 5
      %v296 = vsel %vm224, %v291, %v295
      %v298 = vshrl.u32 %v178, 16
      %v300 = vrot.slane %v298, 4
      %v301 = vshll.u32 %v178, 16
      %v303 = vrot.slane %v301, 5
      %v304 = vor.u32 %v300, %v303
      %v305 = vrot.slane %v304, 4
      %v307 = vshll.u32 %v179, 16
      %v309 = vrot.slane %v307, 5
      %v310 = vsel %vm224, %v305, %v309
      %v311 = vshrl.u32 %v179, 16
      %v313 = vrot.slane %v311, 4
      %v314 = vor.u32 %v313, %v309
      %v315 = vrot.slane %v314, 4
      %v317 = vshll.u32 %v209, 16
      %v319 = vrot.slane %v317, 5
      %v320 = vsel %vm224, %v315, %v319
      %v322 = vshrl.u32 %v180, 16
      %v324 = vrot.slane %v322, 4
      %v325 = vshll.u32 %v180, 16
      %v327 = vrot.slane %v325, 5
      %v328 = vor.u32 %v324, %v327
      %v329 = vrot.slane %v328, 4
      %v331 = vshll.u32 %v181, 16
      %v333 = vrot.slane %v331, 5
      %v334 = vsel %vm224, %v329, %v333
      %v335 = vshrl.u32 %v181, 16
      %v337 = vrot.slane %v335, 4
      %v338 = vor.u32 %v337, %v333
      %v339 = vrot.slane %v338, 4
      %v341 = vshll.u32 %v210, 16
      %v343 = vrot.slane %v341, 5
      %v344 = vsel %vm224, %v339, %v343
      %v346 = vshrl.u32 %v182, 16
      %v348 = vrot.slane %v346, 4
      %v349 = vshll.u32 %v182, 16
      %v351 = vrot.slane %v349, 5
      %v352 = vor.u32 %v348, %v351
      %v353 = vrot.slane %v352, 4
      %v355 = vshll.u32 %v183, 16
      %v357 = vrot.slane %v355, 5
      %v358 = vsel %vm224, %v353, %v357
      %v359 = vshrl.u32 %v183, 16
      %v361 = vrot.slane %v359, 4
      %v362 = vor.u32 %v361, %v357
      %v363 = vrot.slane %v362, 4
      %v365 = vshll.u32 %v211, 16
      %v367 = vrot.slane %v365, 5
      %v368 = vsel %vm224, %v363, %v367
      %v370 = vshrl.u32 %v184, 16
      %v372 = vrot.slane %v370, 4
      %v373 = vshll.u32 %v184, 16
      %v375 = vrot.slane %v373, 5
      %v376 = vor.u32 %v372, %v375
      %v377 = vrot.slane %v376, 4
      %v379 = vshll.u32 %v185, 16
      %v381 = vrot.slane %v379, 5
      %v382 = vsel %vm224, %v377, %v381
      %v383 = vshrl.u32 %v185, 16
      %v385 = vrot.slane %v383, 4
      %v386 = vor.u32 %v385, %v381
      %v387 = vrot.slane %v386, 4
      %v389 = vshll.u32 %v212, 16
      %v391 = vrot.slane %v389, 5
      %v392 = vsel %vm224, %v387, %v391
      %v394 = vshrl.u32 %v186, 16
      %v396 = vrot.slane %v394, 4
      %v397 = vshll.u32 %v186, 16
      %v399 = vrot.slane %v397, 5
      %v400 = vor.u32 %v396, %v399
      %v401 = vrot.slane %v400, 4
      %v403 = vshll.u32 %v187, 16
      %v405 = vrot.slane %v403, 5
      %v406 = vsel %vm224, %v401, %v405
      %v407 = vshrl.u32 %v187, 16
      %v409 = vrot.slane %v407, 4
      %v410 = vor.u32 %v409, %v405
      %v411 = vrot.slane %v410, 4
      %v413 = vshll.u32 %v213, 16
      %v415 = vrot.slane %v413, 5
      %v416 = vsel %vm224, %v411, %v415
      %v418 = vshrl.u32 %v188, 16
      %v420 = vrot.slane %v418, 4
      %v421 = vshll.u32 %v188, 16
      %v423 = vrot.slane %v421, 5
      %v424 = vor.u32 %v420, %v423
      %v425 = vrot.slane %v424, 4
      %v427 = vshll.u32 %v189, 16
      %v429 = vrot.slane %v427, 5
      %v430 = vsel %vm224, %v425, %v429
      %v431 = vshrl.u32 %v189, 16
      %v433 = vrot.slane %v431, 4
      %v434 = vor.u32 %v433, %v429
      %v435 = vrot.slane %v434, 4
      %v437 = vshll.u32 %v214, 16
      %v439 = vrot.slane %v437, 5
      %v440 = vsel %vm224, %v435, %v439
      %v442 = vshrl.u32 %v190, 16
      %v444 = vrot.slane %v442, 4
      %v445 = vshll.u32 %v190, 16
      %v447 = vrot.slane %v445, 5
      %v448 = vor.u32 %v444, %v447
      %v449 = vrot.slane %v448, 4
      %v451 = vshll.u32 %v191, 16
      %v453 = vrot.slane %v451, 5
      %v454 = vsel %vm224, %v449, %v453
      %v455 = vshrl.u32 %v191, 16
      %v457 = vrot.slane %v455, 4
      %v458 = vor.u32 %v457, %v453
      %v459 = vrot.slane %v458, 4
      %v461 = vshll.u32 %v215, 16
      %v463 = vrot.slane %v461, 5
      %v464 = vsel %vm224, %v459, %v463
      %v466 = vshrl.u32 %v192, 16
      %v468 = vrot.slane %v466, 4
      %v469 = vshll.u32 %v192, 16
      %v471 = vrot.slane %v469, 5
      %v472 = vor.u32 %v468, %v471
      %v473 = vrot.slane %v472, 4
      %v475 = vshll.u32 %v193, 16
      %v477 = vrot.slane %v475, 5
      %v478 = vsel %vm224, %v473, %v477
      %v479 = vshrl.u32 %v193, 16
      %v481 = vrot.slane %v479, 4
      %v482 = vor.u32 %v481, %v477
      %v483 = vrot.slane %v482, 4
      %v485 = vshll.u32 %v216, 16
      %v487 = vrot.slane %v485, 5
      %v488 = vsel %vm224, %v483, %v487
      %v490 = vshrl.u32 %v194, 16
      %v492 = vrot.slane %v490, 4
      %v493 = vshll.u32 %v194, 16
      %v495 = vrot.slane %v493, 5
      %v496 = vor.u32 %v492, %v495
      %v497 = vrot.slane %v496, 4
      %v499 = vshll.u32 %v195, 16
      %v501 = vrot.slane %v499, 5
      %v502 = vsel %vm224, %v497, %v501
      %v503 = vshrl.u32 %v195, 16
      %v505 = vrot.slane %v503, 4
      %v506 = vor.u32 %v505, %v501
      %v507 = vrot.slane %v506, 4
      %v509 = vshll.u32 %v217, 16
      %v511 = vrot.slane %v509, 5
      %v512 = vsel %vm224, %v507, %v511
      %v514 = vshrl.u32 %v196, 16
      %v516 = vrot.slane %v514, 4
      %v517 = vshll.u32 %v196, 16
      %v519 = vrot.slane %v517, 5
      %v520 = vor.u32 %v516, %v519
      %v521 = vrot.slane %v520, 4
      %v523 = vshll.u32 %v197, 16
      %v525 = vrot.slane %v523, 5
      %v526 = vsel %vm224, %v521, %v525
      %v527 = vshrl.u32 %v197, 16
      %v529 = vrot.slane %v527, 4
      %v530 = vor.u32 %v529, %v525
      %v531 = vrot.slane %v530, 4
      %v533 = vshll.u32 %v218, 16
      %v535 = vrot.slane %v533, 5
      %v536 = vsel %vm224, %v531, %v535
      %v538 = vshrl.u32 %v198, 16
      %v540 = vrot.slane %v538, 4
      %v541 = vshll.u32 %v198, 16
      %v543 = vrot.slane %v541, 5
      %v544 = vor.u32 %v540, %v543
      %v545 = vrot.slane %v544, 4
      %v547 = vshll.u32 %v199, 16
      %v549 = vrot.slane %v547, 5
      %v550 = vsel %vm224, %v545, %v549
      %v551 = vshrl.u32 %v199, 16
      %v553 = vrot.slane %v551, 4
      %v554 = vor.u32 %v553, %v549
      %v555 = vrot.slane %v554, 4
      %v557 = vshll.u32 %v219, 16
      %v559 = vrot.slane %v557, 5
      %v560 = vsel %vm224, %v555, %v559
      %v562 = vshrl.u32 %v200, 16
      %v564 = vrot.slane %v562, 4
      %v565 = vshll.u32 %v200, 16
      %v567 = vrot.slane %v565, 5
      %v568 = vor.u32 %v564, %v567
      %v569 = vrot.slane %v568, 4
      %v571 = vshll.u32 %v201, 16
      %v573 = vrot.slane %v571, 5
      %v574 = vsel %vm224, %v569, %v573
      %v575 = vshrl.u32 %v201, 16
      %v577 = vrot.slane %v575, 4
      %v578 = vor.u32 %v577, %v573
      %v579 = vrot.slane %v578, 4
      %v581 = vshll.u32 %v220, 16
      %v583 = vrot.slane %v581, 5
      %v584 = vsel %vm224, %v579, %v583
      %v586 = vshrl.u32 %v202, 16
      %v588 = vrot.slane %v586, 4
      %v589 = vshll.u32 %v202, 16
      %v591 = vrot.slane %v589, 5
      %v592 = vor.u32 %v588, %v591
      %v593 = vrot.slane %v592, 4
      %v595 = vshll.u32 %v203, 16
      %v597 = vrot.slane %v595, 5
      %v598 = vsel %vm224, %v593, %v597
      %v599 = vshrl.u32 %v203, 16
      %v601 = vrot.slane %v599, 4
      %v602 = vor.u32 %v601, %v597
      %v603 = vrot.slane %v602, 4
      %v605 = vshll.u32 %v221, 16
      %v607 = vrot.slane %v605, 5
      %v608 = vsel %vm224, %v603, %v607
      %v609 = vld [vmem:[%s1 + $0x8] sm:$0xf]
      %v610 = vld [vmem:[%s1 + $0xc] sm:$0xf]
      %v611 = vunpack.c.l.b16 %v238
      %v612 = vunpack.c.l.b16 %v248
      %v613 = vunpack.c.l.b16 %v262
      %v614 = vunpack.c.l.b16 %v272
      %v615 = vunpack.c.l.b16 %v286
      %v616 = vunpack.c.l.b16 %v296
      %v617 = vunpack.c.l.b16 %v310
      %v618 = vunpack.c.l.b16 %v320
      %v619 = vunpack.c.l.b16 %v334
      %v620 = vunpack.c.l.b16 %v344
      %v621 = vunpack.c.l.b16 %v358
      %v622 = vunpack.c.l.b16 %v368
      %v623 = vunpack.c.l.b16 %v382
      %v624 = vunpack.c.l.b16 %v392
      %v625 = vunpack.c.l.b16 %v406
      %v626 = vunpack.c.l.b16 %v416
      %v627 = vunpack.c.l.b16 %v430
      %v628 = vunpack.c.l.b16 %v440
      %v629 = vunpack.c.l.b16 %v454
      %v630 = vunpack.c.l.b16 %v464
      %v631 = vunpack.c.l.b16 %v478
      %v632 = vunpack.c.l.b16 %v488
      %v633 = vunpack.c.l.b16 %v502
      %v634 = vunpack.c.l.b16 %v512
      %v635 = vunpack.c.l.b16 %v526
      %v636 = vunpack.c.l.b16 %v536
      %v637 = vunpack.c.l.b16 %v550
      %v638 = vunpack.c.l.b16 %v560
      %v639 = vunpack.c.l.b16 %v574
      %v640 = vunpack.c.l.b16 %v584
      %v641 = vunpack.c.l.b16 %v598
      %v642 = vunpack.c.l.b16 %v608
      %v643 = vpack.c.b16 %v612, %v611
      %v644 = vpack.c.b16 %v614, %v613
      %v645 = vpack.c.b16 %v616, %v615
      %v646 = vpack.c.b16 %v618, %v617
      %v647 = vpack.c.b16 %v620, %v619
      %v648 = vpack.c.b16 %v622, %v621
      %v649 = vpack.c.b16 %v624, %v623
      %v650 = vpack.c.b16 %v626, %v625
      %v651 = vpack.c.b16 %v628, %v627
      %v652 = vpack.c.b16 %v630, %v629
      %v653 = vpack.c.b16 %v632, %v631
      %v654 = vpack.c.b16 %v634, %v633
      %v655 = vpack.c.b16 %v636, %v635
      %v656 = vpack.c.b16 %v638, %v637
      %v657 = vpack.c.b16 %v640, %v639
      %v658 = vpack.c.b16 %v642, %v641
      %v661 = vunpack.c.l.b16 %v609
      %v662 = vunpack.c.l.b16 %v610
      %v663 = vpack.c.b16 %v662, %v661
      %vm665 = vcmask 130048
      %v667 = vsel %vm665, %v643, 0
      %v670 = vsel %vm665, %v644, 0
      %v673 = vsel %vm665, %v645, 0
      %v676 = vsel %vm665, %v646, 0
      %v679 = vsel %vm665, %v647, 0
      %v682 = vsel %vm665, %v648, 0
      %v685 = vsel %vm665, %v649, 0
      %v688 = vsel %vm665, %v650, 0
      %v691 = vsel %vm665, %v651, 0
      %v694 = vsel %vm665, %v652, 0
      %v697 = vsel %vm665, %v653, 0
      %v700 = vsel %vm665, %v654, 0
      %v703 = vsel %vm665, %v655, 0
      %v706 = vsel %vm665, %v656, 0
      %v709 = vsel %vm665, %v657, 0
      %v712 = vsel %vm665, %v658, 0
      %714 = vmatpush.bf16.msra.mxu0 0
      %715 = vmatpush.bf16.msra.mxu0 0
      %716 = vmatpush.bf16.msra.mxu0 0
      %717 = vmatpush.bf16.msra.mxu0 0
      %718 = vmatpush.bf16.msra.mxu0 0
      %719 = vmatpush.bf16.msra.mxu0 0
      %720 = vmatpush.bf16.msra.mxu0 0
      %721 = vmatpush.bf16.msra.mxu0 %v663
      %722 = vmatmul.bf16.gmra.mxu0 %v667
      %v723 = vpop.f32.mrf.mxu0
      %v724 = vadd.f32 0.0, %v723
      %v725 = vpop.f32.mrf.mxu0
      %v726 = vadd.f32 0.0, %v725
      %727 = vmatmul.bf16.gmra.mxu0 %v670
      %v728 = vpop.f32.mrf.mxu0
      %v729 = vadd.f32 0.0, %v728
      %v730 = vpop.f32.mrf.mxu0
      %v731 = vadd.f32 0.0, %v730
      %732 = vmatmul.bf16.gmra.mxu0 %v673
      %v733 = vpop.f32.mrf.mxu0
      %v734 = vadd.f32 0.0, %v733
      %v735 = vpop.f32.mrf.mxu0
      %v736 = vadd.f32 0.0, %v735
      %737 = vmatmul.bf16.gmra.mxu0 %v676
      %v738 = vpop.f32.mrf.mxu0
      %v739 = vadd.f32 0.0, %v738
      %v740 = vpop.f32.mrf.mxu0
      %v741 = vadd.f32 0.0, %v740
      %742 = vmatmul.bf16.gmra.mxu0 %v679
      %v743 = vpop.f32.mrf.mxu0
      %v744 = vadd.f32 0.0, %v743
      %v745 = vpop.f32.mrf.mxu0
      %v746 = vadd.f32 0.0, %v745
      %747 = vmatmul.bf16.gmra.mxu0 %v682
      %v748 = vpop.f32.mrf.mxu0
      %v749 = vadd.f32 0.0, %v748
      %v750 = vpop.f32.mrf.mxu0
      %v751 = vadd.f32 0.0, %v750
      %752 = vmatmul.bf16.gmra.mxu0 %v685
      %v753 = vpop.f32.mrf.mxu0
      %v754 = vadd.f32 0.0, %v753
      %v755 = vpop.f32.mrf.mxu0
      %v756 = vadd.f32 0.0, %v755
      %757 = vmatmul.bf16.gmra.mxu0 %v688
      %v758 = vpop.f32.mrf.mxu0
      %v759 = vadd.f32 0.0, %v758
      %v760 = vpop.f32.mrf.mxu0
      %v761 = vadd.f32 0.0, %v760
      %762 = vmatmul.bf16.gmra.mxu0 %v691
      %v763 = vpop.f32.mrf.mxu0
      %v764 = vadd.f32 0.0, %v763
      %v765 = vpop.f32.mrf.mxu0
      %v766 = vadd.f32 0.0, %v765
      %767 = vmatmul.bf16.gmra.mxu0 %v694
      %v768 = vpop.f32.mrf.mxu0
      %v769 = vadd.f32 0.0, %v768
      %v770 = vpop.f32.mrf.mxu0
      %v771 = vadd.f32 0.0, %v770
      %772 = vmatmul.bf16.gmra.mxu0 %v697
      %v773 = vpop.f32.mrf.mxu0
      %v774 = vadd.f32 0.0, %v773
      %v775 = vpop.f32.mrf.mxu0
      %v776 = vadd.f32 0.0, %v775
      %777 = vmatmul.bf16.gmra.mxu0 %v700
      %v778 = vpop.f32.mrf.mxu0
      %v779 = vadd.f32 0.0, %v778
      %v780 = vpop.f32.mrf.mxu0
      %v781 = vadd.f32 0.0, %v780
      %782 = vmatmul.bf16.gmra.mxu0 %v703
      %v783 = vpop.f32.mrf.mxu0
      %v784 = vadd.f32 0.0, %v783
      %v785 = vpop.f32.mrf.mxu0
      %v786 = vadd.f32 0.0, %v785
      %787 = vmatmul.bf16.gmra.mxu0 %v706
      %v788 = vpop.f32.mrf.mxu0
      %v789 = vadd.f32 0.0, %v788
      %v790 = vpop.f32.mrf.mxu0
      %v791 = vadd.f32 0.0, %v790
      %792 = vmatmul.bf16.gmra.mxu0 %v709
      %v793 = vpop.f32.mrf.mxu0
      %v794 = vadd.f32 0.0, %v793
      %v795 = vpop.f32.mrf.mxu0
      %v796 = vadd.f32 0.0, %v795
      %797 = vmatmul.bf16.gmra.mxu0 %v712
      %v798 = vpop.f32.mrf.mxu0
      %v799 = vadd.f32 0.0, %v798
      %v800 = vpop.f32.mrf.mxu0
      %v801 = vadd.f32 0.0, %v800
      %802 = vdwg.mxu0
      %v835 = vunpack.c.l.b16 %v172
      %v836 = vunpack.c.l.b16 %v173
      %v837 = vunpack.c.l.b16 %v174
      %v838 = vunpack.c.l.b16 %v175
      %v839 = vunpack.c.l.b16 %v176
      %v840 = vunpack.c.l.b16 %v177
      %v841 = vunpack.c.l.b16 %v178
      %v842 = vunpack.c.l.b16 %v179
      %v843 = vunpack.c.l.b16 %v180
      %v844 = vunpack.c.l.b16 %v181
      %v845 = vunpack.c.l.b16 %v182
      %v846 = vunpack.c.l.b16 %v183
      %v847 = vunpack.c.l.b16 %v184
      %v848 = vunpack.c.l.b16 %v185
      %v849 = vunpack.c.l.b16 %v186
      %v850 = vunpack.c.l.b16 %v187
      %v851 = vunpack.c.l.b16 %v188
      %v852 = vunpack.c.l.b16 %v189
      %v853 = vunpack.c.l.b16 %v190
      %v854 = vunpack.c.l.b16 %v191
      %v855 = vunpack.c.l.b16 %v192
      %v856 = vunpack.c.l.b16 %v193
      %v857 = vunpack.c.l.b16 %v194
      %v858 = vunpack.c.l.b16 %v195
      %v859 = vunpack.c.l.b16 %v196
      %v860 = vunpack.c.l.b16 %v197
      %v861 = vunpack.c.l.b16 %v198
      %v862 = vunpack.c.l.b16 %v199
      %v863 = vunpack.c.l.b16 %v200
      %v864 = vunpack.c.l.b16 %v201
      %v865 = vunpack.c.l.b16 %v202
      %v866 = vunpack.c.l.b16 %v203
      %v867 = vpack.c.b16 %v836, %v835
      %v868 = vpack.c.b16 %v838, %v837
      %v869 = vpack.c.b16 %v840, %v839
      %v870 = vpack.c.b16 %v842, %v841
      %v871 = vpack.c.b16 %v844, %v843
      %v872 = vpack.c.b16 %v846, %v845
      %v873 = vpack.c.b16 %v848, %v847
      %v874 = vpack.c.b16 %v850, %v849
      %v875 = vpack.c.b16 %v852, %v851
      %v876 = vpack.c.b16 %v854, %v853
      %v877 = vpack.c.b16 %v856, %v855
      %v878 = vpack.c.b16 %v858, %v857
      %v879 = vpack.c.b16 %v860, %v859
      %v880 = vpack.c.b16 %v862, %v861
      %v881 = vpack.c.b16 %v864, %v863
      %v882 = vpack.c.b16 %v866, %v865
      %v885 = vunpack.c.l.b16 %v204
      %v886 = vunpack.c.l.b16 %v205
      %v887 = vpack.c.b16 %v886, %v885
      %v890 = vsel %vm665, %v867, 0
      %v893 = vsel %vm665, %v868, 0
      %v896 = vsel %vm665, %v869, 0
      %v899 = vsel %vm665, %v870, 0
      %v902 = vsel %vm665, %v871, 0
      %v905 = vsel %vm665, %v872, 0
      %v908 = vsel %vm665, %v873, 0
      %v911 = vsel %vm665, %v874, 0
      %v914 = vsel %vm665, %v875, 0
      %v917 = vsel %vm665, %v876, 0
      %v920 = vsel %vm665, %v877, 0
      %v923 = vsel %vm665, %v878, 0
      %v926 = vsel %vm665, %v879, 0
      %v929 = vsel %vm665, %v880, 0
      %v932 = vsel %vm665, %v881, 0
      %v935 = vsel %vm665, %v882, 0
      %937 = vmatpush.bf16.msra.mxu0 0
      %938 = vmatpush.bf16.msra.mxu0 0
      %939 = vmatpush.bf16.msra.mxu0 0
      %940 = vmatpush.bf16.msra.mxu0 0
      %941 = vmatpush.bf16.msra.mxu0 0
      %942 = vmatpush.bf16.msra.mxu0 0
      %943 = vmatpush.bf16.msra.mxu0 0
      %944 = vmatpush.bf16.msra.mxu0 %v887
      %945 = vmatmul.bf16.gmra.mxu0 %v890
      %v946 = vpop.f32.mrf.mxu0
      %v947 = vadd.f32 %v724, %v946
      %v948 = vpop.f32.mrf.mxu0
      %v949 = vadd.f32 %v726, %v948
      %950 = vmatmul.bf16.gmra.mxu0 %v893
      %v951 = vpop.f32.mrf.mxu0
      %v952 = vadd.f32 %v729, %v951
      %v953 = vpop.f32.mrf.mxu0
      %v954 = vadd.f32 %v731, %v953
      %955 = vmatmul.bf16.gmra.mxu0 %v896
      %v956 = vpop.f32.mrf.mxu0
      %v957 = vadd.f32 %v734, %v956
      %v958 = vpop.f32.mrf.mxu0
      %v959 = vadd.f32 %v736, %v958
      %960 = vmatmul.bf16.gmra.mxu0 %v899
      %v961 = vpop.f32.mrf.mxu0
      %v962 = vadd.f32 %v739, %v961
      %v963 = vpop.f32.mrf.mxu0
      %v964 = vadd.f32 %v741, %v963
      %965 = vmatmul.bf16.gmra.mxu0 %v902
      %v966 = vpop.f32.mrf.mxu0
      %v967 = vadd.f32 %v744, %v966
      %v968 = vpop.f32.mrf.mxu0
      %v969 = vadd.f32 %v746, %v968
      %970 = vmatmul.bf16.gmra.mxu0 %v905
      %v971 = vpop.f32.mrf.mxu0
      %v972 = vadd.f32 %v749, %v971
      %v973 = vpop.f32.mrf.mxu0
      %v974 = vadd.f32 %v751, %v973
      %975 = vmatmul.bf16.gmra.mxu0 %v908
      %v976 = vpop.f32.mrf.mxu0
      %v977 = vadd.f32 %v754, %v976
      %v978 = vpop.f32.mrf.mxu0
      %v979 = vadd.f32 %v756, %v978
      %980 = vmatmul.bf16.gmra.mxu0 %v911
      %v981 = vpop.f32.mrf.mxu0
      %v982 = vadd.f32 %v759, %v981
      %v983 = vpop.f32.mrf.mxu0
      %v984 = vadd.f32 %v761, %v983
      %985 = vmatmul.bf16.gmra.mxu0 %v914
      %v986 = vpop.f32.mrf.mxu0
      %v987 = vadd.f32 %v764, %v986
      %v988 = vpop.f32.mrf.mxu0
      %v989 = vadd.f32 %v766, %v988
      %990 = vmatmul.bf16.gmra.mxu0 %v917
      %v991 = vpop.f32.mrf.mxu0
      %v992 = vadd.f32 %v769, %v991
      %v993 = vpop.f32.mrf.mxu0
      %v994 = vadd.f32 %v771, %v993
      %995 = vmatmul.bf16.gmra.mxu0 %v920
      %v996 = vpop.f32.mrf.mxu0
      %v997 = vadd.f32 %v774, %v996
      %v998 = vpop.f32.mrf.mxu0
      %v999 = vadd.f32 %v776, %v998
      %1000 = vmatmul.bf16.gmra.mxu0 %v923
      %v1001 = vpop.f32.mrf.mxu0
      %v1002 = vadd.f32 %v779, %v1001
      %v1003 = vpop.f32.mrf.mxu0
      %v1004 = vadd.f32 %v781, %v1003
      %1005 = vmatmul.bf16.gmra.mxu0 %v926
      %v1006 = vpop.f32.mrf.mxu0
      %v1007 = vadd.f32 %v784, %v1006
      %v1008 = vpop.f32.mrf.mxu0
      %v1009 = vadd.f32 %v786, %v1008
      %1010 = vmatmul.bf16.gmra.mxu0 %v929
      %v1011 = vpop.f32.mrf.mxu0
      %v1012 = vadd.f32 %v789, %v1011
      %v1013 = vpop.f32.mrf.mxu0
      %v1014 = vadd.f32 %v791, %v1013
      %1015 = vmatmul.bf16.gmra.mxu0 %v932
      %v1016 = vpop.f32.mrf.mxu0
      %v1017 = vadd.f32 %v794, %v1016
      %v1018 = vpop.f32.mrf.mxu0
      %v1019 = vadd.f32 %v796, %v1018
      %1020 = vmatmul.bf16.gmra.mxu0 %v935
      %v1021 = vpop.f32.mrf.mxu0
      %v1022 = vadd.f32 %v799, %v1021
      %v1023 = vpop.f32.mrf.mxu0
      %v1024 = vadd.f32 %v801, %v1023
      %1025 = vdwg.mxu0
      %s1026 = scalar_lea.vmem %s165, 12
      %v1027 = vld [vmem:[%s1026] sm:$0xf]
      %v1028 = vld [vmem:[%s1026 + $0x4] sm:$0xf]
      %v1029 = vld [vmem:[%s1026 + $0xc] sm:$0xf]
      %v1030 = vld [vmem:[%s1026 + $0x10] sm:$0xf]
      %v1031 = vld [vmem:[%s1026 + $0x18] sm:$0xf]
      %v1032 = vld [vmem:[%s1026 + $0x1c] sm:$0xf]
      %v1033 = vld [vmem:[%s1026 + $0x24] sm:$0xf]
      %v1034 = vld [vmem:[%s1026 + $0x28] sm:$0xf]
      %v1035 = vld [vmem:[%s1026 + $0x30] sm:$0xf]
      %v1036 = vld [vmem:[%s1026 + $0x34] sm:$0xf]
      %v1037 = vld [vmem:[%s1026 + $0x3c] sm:$0xf]
      %v1038 = vld [vmem:[%s1026 + $0x40] sm:$0xf]
      %v1039 = vld [vmem:[%s1026 + $0x48] sm:$0xf]
      %v1040 = vld [vmem:[%s1026 + $0x4c] sm:$0xf]
      %v1041 = vld [vmem:[%s1026 + $0x54] sm:$0xf]
      %v1042 = vld [vmem:[%s1026 + $0x58] sm:$0xf]
      %v1043 = vld [vmem:[%s1026 + $0x60] sm:$0xf]
      %v1044 = vld [vmem:[%s1026 + $0x64] sm:$0xf]
      %v1045 = vld [vmem:[%s1026 + $0x6c] sm:$0xf]
      %v1046 = vld [vmem:[%s1026 + $0x70] sm:$0xf]
      %v1047 = vld [vmem:[%s1026 + $0x78] sm:$0xf]
      %v1048 = vld [vmem:[%s1026 + $0x7c] sm:$0xf]
      %v1049 = vld [vmem:[%s1026 + $0x84] sm:$0xf]
      %v1050 = vld [vmem:[%s1026 + $0x88] sm:$0xf]
      %v1051 = vld [vmem:[%s1026 + $0x90] sm:$0xf]
      %v1052 = vld [vmem:[%s1026 + $0x94] sm:$0xf]
      %v1053 = vld [vmem:[%s1026 + $0x9c] sm:$0xf]
      %v1054 = vld [vmem:[%s1026 + $0xa0] sm:$0xf]
      %v1055 = vld [vmem:[%s1026 + $0xa8] sm:$0xf]
      %v1056 = vld [vmem:[%s1026 + $0xac] sm:$0xf]
      %v1057 = vld [vmem:[%s1026 + $0xb4] sm:$0xf]
      %v1058 = vld [vmem:[%s1026 + $0xb8] sm:$0xf]
      %v1059 = vld [vmem:[%s1 + $0x10] sm:$0xf]
      %v1060 = vld [vmem:[%s1 + $0x14] sm:$0xf]
      %v1093 = vunpack.c.l.b16 %v1027
      %v1094 = vunpack.c.l.b16 %v1028
      %v1095 = vunpack.c.l.b16 %v1029
      %v1096 = vunpack.c.l.b16 %v1030
      %v1097 = vunpack.c.l.b16 %v1031
      %v1098 = vunpack.c.l.b16 %v1032
      %v1099 = vunpack.c.l.b16 %v1033
      %v1100 = vunpack.c.l.b16 %v1034
      %v1101 = vunpack.c.l.b16 %v1035
      %v1102 = vunpack.c.l.b16 %v1036
      %v1103 = vunpack.c.l.b16 %v1037
      %v1104 = vunpack.c.l.b16 %v1038
      %v1105 = vunpack.c.l.b16 %v1039
      %v1106 = vunpack.c.l.b16 %v1040
      %v1107 = vunpack.c.l.b16 %v1041
      %v1108 = vunpack.c.l.b16 %v1042
      %v1109 = vunpack.c.l.b16 %v1043
      %v1110 = vunpack.c.l.b16 %v1044
      %v1111 = vunpack.c.l.b16 %v1045
      %v1112 = vunpack.c.l.b16 %v1046
      %v1113 = vunpack.c.l.b16 %v1047
      %v1114 = vunpack.c.l.b16 %v1048
      %v1115 = vunpack.c.l.b16 %v1049
      %v1116 = vunpack.c.l.b16 %v1050
      %v1117 = vunpack.c.l.b16 %v1051
      %v1118 = vunpack.c.l.b16 %v1052
      %v1119 = vunpack.c.l.b16 %v1053
      %v1120 = vunpack.c.l.b16 %v1054
      %v1121 = vunpack.c.l.b16 %v1055
      %v1122 = vunpack.c.l.b16 %v1056
      %v1123 = vunpack.c.l.b16 %v1057
      %v1124 = vunpack.c.l.b16 %v1058
      %v1125 = vpack.c.b16 %v1094, %v1093
      %v1126 = vpack.c.b16 %v1096, %v1095
      %v1127 = vpack.c.b16 %v1098, %v1097
      %v1128 = vpack.c.b16 %v1100, %v1099
      %v1129 = vpack.c.b16 %v1102, %v1101
      %v1130 = vpack.c.b16 %v1104, %v1103
      %v1131 = vpack.c.b16 %v1106, %v1105
      %v1132 = vpack.c.b16 %v1108, %v1107
      %v1133 = vpack.c.b16 %v1110, %v1109
      %v1134 = vpack.c.b16 %v1112, %v1111
      %v1135 = vpack.c.b16 %v1114, %v1113
      %v1136 = vpack.c.b16 %v1116, %v1115
      %v1137 = vpack.c.b16 %v1118, %v1117
      %v1138 = vpack.c.b16 %v1120, %v1119
      %v1139 = vpack.c.b16 %v1122, %v1121
      %v1140 = vpack.c.b16 %v1124, %v1123
      %v1143 = vunpack.c.l.b16 %v1059
      %v1144 = vunpack.c.l.b16 %v1060
      %v1145 = vpack.c.b16 %v1144, %v1143
      %v1148 = vsel %vm665, %v1125, 0
      %v1151 = vsel %vm665, %v1126, 0
      %v1154 = vsel %vm665, %v1127, 0
      %v1157 = vsel %vm665, %v1128, 0
      %v1160 = vsel %vm665, %v1129, 0
      %v1163 = vsel %vm665, %v1130, 0
      %v1166 = vsel %vm665, %v1131, 0
      %v1169 = vsel %vm665, %v1132, 0
      %v1172 = vsel %vm665, %v1133, 0
      %v1175 = vsel %vm665, %v1134, 0
      %v1178 = vsel %vm665, %v1135, 0
      %v1181 = vsel %vm665, %v1136, 0
      %v1184 = vsel %vm665, %v1137, 0
      %v1187 = vsel %vm665, %v1138, 0
      %v1190 = vsel %vm665, %v1139, 0
      %v1193 = vsel %vm665, %v1140, 0
      %1195 = vmatpush.bf16.msra.mxu0 0
      %1196 = vmatpush.bf16.msra.mxu0 0
      %1197 = vmatpush.bf16.msra.mxu0 0
      %1198 = vmatpush.bf16.msra.mxu0 0
      %1199 = vmatpush.bf16.msra.mxu0 0
      %1200 = vmatpush.bf16.msra.mxu0 0
      %1201 = vmatpush.bf16.msra.mxu0 0
      %1202 = vmatpush.bf16.msra.mxu0 %v1145
      %1203 = vmatmul.bf16.gmra.mxu0 %v1148
      %v1204 = vpop.f32.mrf.mxu0
      %v1205 = vadd.f32 0.0, %v1204
      %v1206 = vpop.f32.mrf.mxu0
      %v1207 = vadd.f32 0.0, %v1206
      %1208 = vmatmul.bf16.gmra.mxu0 %v1151
      %v1209 = vpop.f32.mrf.mxu0
      %v1210 = vadd.f32 0.0, %v1209
      %v1211 = vpop.f32.mrf.mxu0
      %v1212 = vadd.f32 0.0, %v1211
      %1213 = vmatmul.bf16.gmra.mxu0 %v1154
      %v1214 = vpop.f32.mrf.mxu0
      %v1215 = vadd.f32 0.0, %v1214
      %v1216 = vpop.f32.mrf.mxu0
      %v1217 = vadd.f32 0.0, %v1216
      %1218 = vmatmul.bf16.gmra.mxu0 %v1157
      %v1219 = vpop.f32.mrf.mxu0
      %v1220 = vadd.f32 0.0, %v1219
      %v1221 = vpop.f32.mrf.mxu0
      %v1222 = vadd.f32 0.0, %v1221
      %1223 = vmatmul.bf16.gmra.mxu0 %v1160
      %v1224 = vpop.f32.mrf.mxu0
      %v1225 = vadd.f32 0.0, %v1224
      %v1226 = vpop.f32.mrf.mxu0
      %v1227 = vadd.f32 0.0, %v1226
      %1228 = vmatmul.bf16.gmra.mxu0 %v1163
      %v1229 = vpop.f32.mrf.mxu0
      %v1230 = vadd.f32 0.0, %v1229
      %v1231 = vpop.f32.mrf.mxu0
      %v1232 = vadd.f32 0.0, %v1231
      %1233 = vmatmul.bf16.gmra.mxu0 %v1166
      %v1234 = vpop.f32.mrf.mxu0
      %v1235 = vadd.f32 0.0, %v1234
      %v1236 = vpop.f32.mrf.mxu0
      %v1237 = vadd.f32 0.0, %v1236
      %1238 = vmatmul.bf16.gmra.mxu0 %v1169
      %v1239 = vpop.f32.mrf.mxu0
      %v1240 = vadd.f32 0.0, %v1239
      %v1241 = vpop.f32.mrf.mxu0
      %v1242 = vadd.f32 0.0, %v1241
      %1243 = vmatmul.bf16.gmra.mxu0 %v1172
      %v1244 = vpop.f32.mrf.mxu0
      %v1245 = vadd.f32 0.0, %v1244
      %v1246 = vpop.f32.mrf.mxu0
      %v1247 = vadd.f32 0.0, %v1246
      %1248 = vmatmul.bf16.gmra.mxu0 %v1175
      %v1249 = vpop.f32.mrf.mxu0
      %v1250 = vadd.f32 0.0, %v1249
      %v1251 = vpop.f32.mrf.mxu0
      %v1252 = vadd.f32 0.0, %v1251
      %1253 = vmatmul.bf16.gmra.mxu0 %v1178
      %v1254 = vpop.f32.mrf.mxu0
      %v1255 = vadd.f32 0.0, %v1254
      %v1256 = vpop.f32.mrf.mxu0
      %v1257 = vadd.f32 0.0, %v1256
      %1258 = vmatmul.bf16.gmra.mxu0 %v1181
      %v1259 = vpop.f32.mrf.mxu0
      %v1260 = vadd.f32 0.0, %v1259
      %v1261 = vpop.f32.mrf.mxu0
      %v1262 = vadd.f32 0.0, %v1261
      %1263 = vmatmul.bf16.gmra.mxu0 %v1184
      %v1264 = vpop.f32.mrf.mxu0
      %v1265 = vadd.f32 0.0, %v1264
      %v1266 = vpop.f32.mrf.mxu0
      %v1267 = vadd.f32 0.0, %v1266
      %1268 = vmatmul.bf16.gmra.mxu0 %v1187
      %v1269 = vpop.f32.mrf.mxu0
      %v1270 = vadd.f32 0.0, %v1269
      %v1271 = vpop.f32.mrf.mxu0
      %v1272 = vadd.f32 0.0, %v1271
      %1273 = vmatmul.bf16.gmra.mxu0 %v1190
      %v1274 = vpop.f32.mrf.mxu0
      %v1275 = vadd.f32 0.0, %v1274
      %v1276 = vpop.f32.mrf.mxu0
      %v1277 = vadd.f32 0.0, %v1276
      %1278 = vmatmul.bf16.gmra.mxu0 %v1193
      %v1279 = vpop.f32.mrf.mxu0
      %v1280 = vadd.f32 0.0, %v1279
      %v1281 = vpop.f32.mrf.mxu0
      %v1282 = vadd.f32 0.0, %v1281
      %1283 = vdwg.mxu0
      %v1284 = vadd.f32 %v947, %v1205
      %v1285 = vadd.f32 %v949, %v1207
      %v1286 = vadd.f32 %v952, %v1210
      %v1287 = vadd.f32 %v954, %v1212
      %v1288 = vadd.f32 %v957, %v1215
      %v1289 = vadd.f32 %v959, %v1217
      %v1290 = vadd.f32 %v962, %v1220
      %v1291 = vadd.f32 %v964, %v1222
      %v1292 = vadd.f32 %v967, %v1225
      %v1293 = vadd.f32 %v969, %v1227
      %v1294 = vadd.f32 %v972, %v1230
      %v1295 = vadd.f32 %v974, %v1232
      %v1296 = vadd.f32 %v977, %v1235
      %v1297 = vadd.f32 %v979, %v1237
      %v1298 = vadd.f32 %v982, %v1240
      %v1299 = vadd.f32 %v984, %v1242
      %v1300 = vadd.f32 %v987, %v1245
      %v1301 = vadd.f32 %v989, %v1247
      %v1302 = vadd.f32 %v992, %v1250
      %v1303 = vadd.f32 %v994, %v1252
      %v1304 = vadd.f32 %v997, %v1255
      %v1305 = vadd.f32 %v999, %v1257
      %v1306 = vadd.f32 %v1002, %v1260
      %v1307 = vadd.f32 %v1004, %v1262
      %v1308 = vadd.f32 %v1007, %v1265
      %v1309 = vadd.f32 %v1009, %v1267
      %v1310 = vadd.f32 %v1012, %v1270
      %v1311 = vadd.f32 %v1014, %v1272
      %v1312 = vadd.f32 %v1017, %v1275
      %v1313 = vadd.f32 %v1019, %v1277
      %v1314 = vadd.f32 %v1022, %v1280
      %v1315 = vadd.f32 %v1024, %v1282
      %v1316 = vld [vmem:[%s1026] sm:$0xf]
      %v1317 = vld [vmem:[%s1026 + $0x4] sm:$0xf]
      %v1318 = vld [vmem:[%s1026 + $0x8] sm:$0x1]
      %v1319 = vld [vmem:[%s1026 + $0xc] sm:$0xf]
      %v1320 = vld [vmem:[%s1026 + $0x10] sm:$0xf]
      %v1321 = vld [vmem:[%s1026 + $0x14] sm:$0x1]
      %v1322 = vld [vmem:[%s1026 + $0x18] sm:$0xf]
      %v1323 = vld [vmem:[%s1026 + $0x1c] sm:$0xf]
      %v1324 = vld [vmem:[%s1026 + $0x20] sm:$0x1]
      %v1325 = vld [vmem:[%s1026 + $0x24] sm:$0xf]
      %v1326 = vld [vmem:[%s1026 + $0x28] sm:$0xf]
      %v1327 = vld [vmem:[%s1026 + $0x2c] sm:$0x1]
      %v1328 = vld [vmem:[%s1026 + $0x30] sm:$0xf]
      %v1329 = vld [vmem:[%s1026 + $0x34] sm:$0xf]
      %v1330 = vld [vmem:[%s1026 + $0x38] sm:$0x1]
      %v1331 = vld [vmem:[%s1026 + $0x3c] sm:$0xf]
      %v1332 = vld [vmem:[%s1026 + $0x40] sm:$0xf]
      %v1333 = vld [vmem:[%s1026 + $0x44] sm:$0x1]
      %v1334 = vld [vmem:[%s1026 + $0x48] sm:$0xf]
      %v1335 = vld [vmem:[%s1026 + $0x4c] sm:$0xf]
      %v1336 = vld [vmem:[%s1026 + $0x50] sm:$0x1]
      %v1337 = vld [vmem:[%s1026 + $0x54] sm:$0xf]
      %v1338 = vld [vmem:[%s1026 + $0x58] sm:$0xf]
      %v1339 = vld [vmem:[%s1026 + $0x5c] sm:$0x1]
      %v1340 = vld [vmem:[%s1026 + $0x60] sm:$0xf]
      %v1341 = vld [vmem:[%s1026 + $0x64] sm:$0xf]
      %v1342 = vld [vmem:[%s1026 + $0x68] sm:$0x1]
      %v1343 = vld [vmem:[%s1026 + $0x6c] sm:$0xf]
      %v1344 = vld [vmem:[%s1026 + $0x70] sm:$0xf]
      %v1345 = vld [vmem:[%s1026 + $0x74] sm:$0x1]
      %v1346 = vld [vmem:[%s1026 + $0x78] sm:$0xf]
      %v1347 = vld [vmem:[%s1026 + $0x7c] sm:$0xf]
      %v1348 = vld [vmem:[%s1026 + $0x80] sm:$0x1]
      %v1349 = vld [vmem:[%s1026 + $0x84] sm:$0xf]
      %v1350 = vld [vmem:[%s1026 + $0x88] sm:$0xf]
      %v1351 = vld [vmem:[%s1026 + $0x8c] sm:$0x1]
      %v1352 = vld [vmem:[%s1026 + $0x90] sm:$0xf]
      %v1353 = vld [vmem:[%s1026 + $0x94] sm:$0xf]
      %v1354 = vld [vmem:[%s1026 + $0x98] sm:$0x1]
      %v1355 = vld [vmem:[%s1026 + $0x9c] sm:$0xf]
      %v1356 = vld [vmem:[%s1026 + $0xa0] sm:$0xf]
      %v1357 = vld [vmem:[%s1026 + $0xa4] sm:$0x1]
      %v1358 = vld [vmem:[%s1026 + $0xa8] sm:$0xf]
      %v1359 = vld [vmem:[%s1026 + $0xac] sm:$0xf]
      %v1360 = vld [vmem:[%s1026 + $0xb0] sm:$0x1]
      %v1361 = vld [vmem:[%s1026 + $0xb4] sm:$0xf]
      %v1362 = vld [vmem:[%s1026 + $0xb8] sm:$0xf]
      %v1363 = vld [vmem:[%s1026 + $0xbc] sm:$0x1]
      %v1365 = vshrl.u32 %v1316, 16
      %v1367 = vrot.slane %v1365, 4
      %v1368 = vshll.u32 %v1316, 16
      %v1370 = vrot.slane %v1368, 5
      %v1371 = vor.u32 %v1367, %v1370
      %v1372 = vrot.slane %v1371, 4
      %v1374 = vshll.u32 %v1317, 16
      %v1376 = vrot.slane %v1374, 5
      %v1377 = vsel %vm224, %v1372, %v1376
      %v1378 = vshrl.u32 %v1317, 16
      %v1380 = vrot.slane %v1378, 4
      %v1381 = vor.u32 %v1380, %v1376
      %v1382 = vrot.slane %v1381, 4
      %v1384 = vshll.u32 %v1318, 16
      %v1386 = vrot.slane %v1384, 5
      %v1387 = vsel %vm224, %v1382, %v1386
      %v1389 = vshrl.u32 %v1319, 16
      %v1391 = vrot.slane %v1389, 4
      %v1392 = vshll.u32 %v1319, 16
      %v1394 = vrot.slane %v1392, 5
      %v1395 = vor.u32 %v1391, %v1394
      %v1396 = vrot.slane %v1395, 4
      %v1398 = vshll.u32 %v1320, 16
      %v1400 = vrot.slane %v1398, 5
      %v1401 = vsel %vm224, %v1396, %v1400
      %v1402 = vshrl.u32 %v1320, 16
      %v1404 = vrot.slane %v1402, 4
      %v1405 = vor.u32 %v1404, %v1400
      %v1406 = vrot.slane %v1405, 4
      %v1408 = vshll.u32 %v1321, 16
      %v1410 = vrot.slane %v1408, 5
      %v1411 = vsel %vm224, %v1406, %v1410
      %v1413 = vshrl.u32 %v1322, 16
      %v1415 = vrot.slane %v1413, 4
      %v1416 = vshll.u32 %v1322, 16
      %v1418 = vrot.slane %v1416, 5
      %v1419 = vor.u32 %v1415, %v1418
      %v1420 = vrot.slane %v1419, 4
      %v1422 = vshll.u32 %v1323, 16
      %v1424 = vrot.slane %v1422, 5
      %v1425 = vsel %vm224, %v1420, %v1424
      %v1426 = vshrl.u32 %v1323, 16
      %v1428 = vrot.slane %v1426, 4
      %v1429 = vor.u32 %v1428, %v1424
      %v1430 = vrot.slane %v1429, 4
      %v1432 = vshll.u32 %v1324, 16
      %v1434 = vrot.slane %v1432, 5
      %v1435 = vsel %vm224, %v1430, %v1434
      %v1437 = vshrl.u32 %v1325, 16
      %v1439 = vrot.slane %v1437, 4
      %v1440 = vshll.u32 %v1325, 16
      %v1442 = vrot.slane %v1440, 5
      %v1443 = vor.u32 %v1439, %v1442
      %v1444 = vrot.slane %v1443, 4
      %v1446 = vshll.u32 %v1326, 16
      %v1448 = vrot.slane %v1446, 5
      %v1449 = vsel %vm224, %v1444, %v1448
      %v1450 = vshrl.u32 %v1326, 16
      %v1452 = vrot.slane %v1450, 4
      %v1453 = vor.u32 %v1452, %v1448
      %v1454 = vrot.slane %v1453, 4
      %v1456 = vshll.u32 %v1327, 16
      %v1458 = vrot.slane %v1456, 5
      %v1459 = vsel %vm224, %v1454, %v1458
      %v1461 = vshrl.u32 %v1328, 16
      %v1463 = vrot.slane %v1461, 4
      %v1464 = vshll.u32 %v1328, 16
      %v1466 = vrot.slane %v1464, 5
      %v1467 = vor.u32 %v1463, %v1466
      %v1468 = vrot.slane %v1467, 4
      %v1470 = vshll.u32 %v1329, 16
      %v1472 = vrot.slane %v1470, 5
      %v1473 = vsel %vm224, %v1468, %v1472
      %v1474 = vshrl.u32 %v1329, 16
      %v1476 = vrot.slane %v1474, 4
      %v1477 = vor.u32 %v1476, %v1472
      %v1478 = vrot.slane %v1477, 4
      %v1480 = vshll.u32 %v1330, 16
      %v1482 = vrot.slane %v1480, 5
      %v1483 = vsel %vm224, %v1478, %v1482
      %v1485 = vshrl.u32 %v1331, 16
      %v1487 = vrot.slane %v1485, 4
      %v1488 = vshll.u32 %v1331, 16
      %v1490 = vrot.slane %v1488, 5
      %v1491 = vor.u32 %v1487, %v1490
      %v1492 = vrot.slane %v1491, 4
      %v1494 = vshll.u32 %v1332, 16
      %v1496 = vrot.slane %v1494, 5
      %v1497 = vsel %vm224, %v1492, %v1496
      %v1498 = vshrl.u32 %v1332, 16
      %v1500 = vrot.slane %v1498, 4
      %v1501 = vor.u32 %v1500, %v1496
      %v1502 = vrot.slane %v1501, 4
      %v1504 = vshll.u32 %v1333, 16
      %v1506 = vrot.slane %v1504, 5
      %v1507 = vsel %vm224, %v1502, %v1506
      %v1509 = vshrl.u32 %v1334, 16
      %v1511 = vrot.slane %v1509, 4
      %v1512 = vshll.u32 %v1334, 16
      %v1514 = vrot.slane %v1512, 5
      %v1515 = vor.u32 %v1511, %v1514
      %v1516 = vrot.slane %v1515, 4
      %v1518 = vshll.u32 %v1335, 16
      %v1520 = vrot.slane %v1518, 5
      %v1521 = vsel %vm224, %v1516, %v1520
      %v1522 = vshrl.u32 %v1335, 16
      %v1524 = vrot.slane %v1522, 4
      %v1525 = vor.u32 %v1524, %v1520
      %v1526 = vrot.slane %v1525, 4
      %v1528 = vshll.u32 %v1336, 16
      %v1530 = vrot.slane %v1528, 5
      %v1531 = vsel %vm224, %v1526, %v1530
      %v1533 = vshrl.u32 %v1337, 16
      %v1535 = vrot.slane %v1533, 4
      %v1536 = vshll.u32 %v1337, 16
      %v1538 = vrot.slane %v1536, 5
      %v1539 = vor.u32 %v1535, %v1538
      %v1540 = vrot.slane %v1539, 4
      %v1542 = vshll.u32 %v1338, 16
      %v1544 = vrot.slane %v1542, 5
      %v1545 = vsel %vm224, %v1540, %v1544
      %v1546 = vshrl.u32 %v1338, 16
      %v1548 = vrot.slane %v1546, 4
      %v1549 = vor.u32 %v1548, %v1544
      %v1550 = vrot.slane %v1549, 4
      %v1552 = vshll.u32 %v1339, 16
      %v1554 = vrot.slane %v1552, 5
      %v1555 = vsel %vm224, %v1550, %v1554
      %v1557 = vshrl.u32 %v1340, 16
      %v1559 = vrot.slane %v1557, 4
      %v1560 = vshll.u32 %v1340, 16
      %v1562 = vrot.slane %v1560, 5
      %v1563 = vor.u32 %v1559, %v1562
      %v1564 = vrot.slane %v1563, 4
      %v1566 = vshll.u32 %v1341, 16
      %v1568 = vrot.slane %v1566, 5
      %v1569 = vsel %vm224, %v1564, %v1568
      %v1570 = vshrl.u32 %v1341, 16
      %v1572 = vrot.slane %v1570, 4
      %v1573 = vor.u32 %v1572, %v1568
      %v1574 = vrot.slane %v1573, 4
      %v1576 = vshll.u32 %v1342, 16
      %v1578 = vrot.slane %v1576, 5
      %v1579 = vsel %vm224, %v1574, %v1578
      %v1581 = vshrl.u32 %v1343, 16
      %v1583 = vrot.slane %v1581, 4
      %v1584 = vshll.u32 %v1343, 16
      %v1586 = vrot.slane %v1584, 5
      %v1587 = vor.u32 %v1583, %v1586
      %v1588 = vrot.slane %v1587, 4
      %v1590 = vshll.u32 %v1344, 16
      %v1592 = vrot.slane %v1590, 5
      %v1593 = vsel %vm224, %v1588, %v1592
      %v1594 = vshrl.u32 %v1344, 16
      %v1596 = vrot.slane %v1594, 4
      %v1597 = vor.u32 %v1596, %v1592
      %v1598 = vrot.slane %v1597, 4
      %v1600 = vshll.u32 %v1345, 16
      %v1602 = vrot.slane %v1600, 5
      %v1603 = vsel %vm224, %v1598, %v1602
      %v1605 = vshrl.u32 %v1346, 16
      %v1607 = vrot.slane %v1605, 4
      %v1608 = vshll.u32 %v1346, 16
      %v1610 = vrot.slane %v1608, 5
      %v1611 = vor.u32 %v1607, %v1610
      %v1612 = vrot.slane %v1611, 4
      %v1614 = vshll.u32 %v1347, 16
      %v1616 = vrot.slane %v1614, 5
      %v1617 = vsel %vm224, %v1612, %v1616
      %v1618 = vshrl.u32 %v1347, 16
      %v1620 = vrot.slane %v1618, 4
      %v1621 = vor.u32 %v1620, %v1616
      %v1622 = vrot.slane %v1621, 4
      %v1624 = vshll.u32 %v1348, 16
      %v1626 = vrot.slane %v1624, 5
      %v1627 = vsel %vm224, %v1622, %v1626
      %v1629 = vshrl.u32 %v1349, 16
      %v1631 = vrot.slane %v1629, 4
      %v1632 = vshll.u32 %v1349, 16
      %v1634 = vrot.slane %v1632, 5
      %v1635 = vor.u32 %v1631, %v1634
      %v1636 = vrot.slane %v1635, 4
      %v1638 = vshll.u32 %v1350, 16
      %v1640 = vrot.slane %v1638, 5
      %v1641 = vsel %vm224, %v1636, %v1640
      %v1642 = vshrl.u32 %v1350, 16
      %v1644 = vrot.slane %v1642, 4
      %v1645 = vor.u32 %v1644, %v1640
      %v1646 = vrot.slane %v1645, 4
      %v1648 = vshll.u32 %v1351, 16
      %v1650 = vrot.slane %v1648, 5
      %v1651 = vsel %vm224, %v1646, %v1650
      %v1653 = vshrl.u32 %v1352, 16
      %v1655 = vrot.slane %v1653, 4
      %v1656 = vshll.u32 %v1352, 16
      %v1658 = vrot.slane %v1656, 5
      %v1659 = vor.u32 %v1655, %v1658
      %v1660 = vrot.slane %v1659, 4
      %v1662 = vshll.u32 %v1353, 16
      %v1664 = vrot.slane %v1662, 5
      %v1665 = vsel %vm224, %v1660, %v1664
      %v1666 = vshrl.u32 %v1353, 16
      %v1668 = vrot.slane %v1666, 4
      %v1669 = vor.u32 %v1668, %v1664
      %v1670 = vrot.slane %v1669, 4
      %v1672 = vshll.u32 %v1354, 16
      %v1674 = vrot.slane %v1672, 5
      %v1675 = vsel %vm224, %v1670, %v1674
      %v1677 = vshrl.u32 %v1355, 16
      %v1679 = vrot.slane %v1677, 4
      %v1680 = vshll.u32 %v1355, 16
      %v1682 = vrot.slane %v1680, 5
      %v1683 = vor.u32 %v1679, %v1682
      %v1684 = vrot.slane %v1683, 4
      %v1686 = vshll.u32 %v1356, 16
      %v1688 = vrot.slane %v1686, 5
      %v1689 = vsel %vm224, %v1684, %v1688
      %v1690 = vshrl.u32 %v1356, 16
      %v1692 = vrot.slane %v1690, 4
      %v1693 = vor.u32 %v1692, %v1688
      %v1694 = vrot.slane %v1693, 4
      %v1696 = vshll.u32 %v1357, 16
      %v1698 = vrot.slane %v1696, 5
      %v1699 = vsel %vm224, %v1694, %v1698
      %v1701 = vshrl.u32 %v1358, 16
      %v1703 = vrot.slane %v1701, 4
      %v1704 = vshll.u32 %v1358, 16
      %v1706 = vrot.slane %v1704, 5
      %v1707 = vor.u32 %v1703, %v1706
      %v1708 = vrot.slane %v1707, 4
      %v1710 = vshll.u32 %v1359, 16
      %v1712 = vrot.slane %v1710, 5
      %v1713 = vsel %vm224, %v1708, %v1712
      %v1714 = vshrl.u32 %v1359, 16
      %v1716 = vrot.slane %v1714, 4
      %v1717 = vor.u32 %v1716, %v1712
      %v1718 = vrot.slane %v1717, 4
      %v1720 = vshll.u32 %v1360, 16
      %v1722 = vrot.slane %v1720, 5
      %v1723 = vsel %vm224, %v1718, %v1722
      %v1725 = vshrl.u32 %v1361, 16
      %v1727 = vrot.slane %v1725, 4
      %v1728 = vshll.u32 %v1361, 16
      %v1730 = vrot.slane %v1728, 5
      %v1731 = vor.u32 %v1727, %v1730
      %v1732 = vrot.slane %v1731, 4
      %v1734 = vshll.u32 %v1362, 16
      %v1736 = vrot.slane %v1734, 5
      %v1737 = vsel %vm224, %v1732, %v1736
      %v1738 = vshrl.u32 %v1362, 16
      %v1740 = vrot.slane %v1738, 4
      %v1741 = vor.u32 %v1740, %v1736
      %v1742 = vrot.slane %v1741, 4
      %v1744 = vshll.u32 %v1363, 16
      %v1746 = vrot.slane %v1744, 5
      %v1747 = vsel %vm224, %v1742, %v1746
      %v1748 = vld [vmem:[%s1 + $0x18] sm:$0xf]
      %v1749 = vld [vmem:[%s1 + $0x1c] sm:$0xf]
      %v1750 = vunpack.c.l.b16 %v1377
      %v1751 = vunpack.c.l.b16 %v1387
      %v1752 = vunpack.c.l.b16 %v1401
      %v1753 = vunpack.c.l.b16 %v1411
      %v1754 = vunpack.c.l.b16 %v1425
      %v1755 = vunpack.c.l.b16 %v1435
      %v1756 = vunpack.c.l.b16 %v1449
      %v1757 = vunpack.c.l.b16 %v1459
      %v1758 = vunpack.c.l.b16 %v1473
      %v1759 = vunpack.c.l.b16 %v1483
      %v1760 = vunpack.c.l.b16 %v1497
      %v1761 = vunpack.c.l.b16 %v1507
      %v1762 = vunpack.c.l.b16 %v1521
      %v1763 = vunpack.c.l.b16 %v1531
      %v1764 = vunpack.c.l.b16 %v1545
      %v1765 = vunpack.c.l.b16 %v1555
      %v1766 = vunpack.c.l.b16 %v1569
      %v1767 = vunpack.c.l.b16 %v1579
      %v1768 = vunpack.c.l.b16 %v1593
      %v1769 = vunpack.c.l.b16 %v1603
      %v1770 = vunpack.c.l.b16 %v1617
      %v1771 = vunpack.c.l.b16 %v1627
      %v1772 = vunpack.c.l.b16 %v1641
      %v1773 = vunpack.c.l.b16 %v1651
      %v1774 = vunpack.c.l.b16 %v1665
      %v1775 = vunpack.c.l.b16 %v1675
      %v1776 = vunpack.c.l.b16 %v1689
      %v1777 = vunpack.c.l.b16 %v1699
      %v1778 = vunpack.c.l.b16 %v1713
      %v1779 = vunpack.c.l.b16 %v1723
      %v1780 = vunpack.c.l.b16 %v1737
      %v1781 = vunpack.c.l.b16 %v1747
      %v1782 = vpack.c.b16 %v1751, %v1750
      %v1783 = vpack.c.b16 %v1753, %v1752
      %v1784 = vpack.c.b16 %v1755, %v1754
      %v1785 = vpack.c.b16 %v1757, %v1756
      %v1786 = vpack.c.b16 %v1759, %v1758
      %v1787 = vpack.c.b16 %v1761, %v1760
      %v1788 = vpack.c.b16 %v1763, %v1762
      %v1789 = vpack.c.b16 %v1765, %v1764
      %v1790 = vpack.c.b16 %v1767, %v1766
      %v1791 = vpack.c.b16 %v1769, %v1768
      %v1792 = vpack.c.b16 %v1771, %v1770
      %v1793 = vpack.c.b16 %v1773, %v1772
      %v1794 = vpack.c.b16 %v1775, %v1774
      %v1795 = vpack.c.b16 %v1777, %v1776
      %v1796 = vpack.c.b16 %v1779, %v1778
      %v1797 = vpack.c.b16 %v1781, %v1780
      %v1800 = vunpack.c.l.b16 %v1748
      %v1801 = vunpack.c.l.b16 %v1749
      %v1802 = vpack.c.b16 %v1801, %v1800
      %v1805 = vsel %vm665, %v1782, 0
      %v1808 = vsel %vm665, %v1783, 0
      %v1811 = vsel %vm665, %v1784, 0
      %v1814 = vsel %vm665, %v1785, 0
      %v1817 = vsel %vm665, %v1786, 0
      %v1820 = vsel %vm665, %v1787, 0
      %v1823 = vsel %vm665, %v1788, 0
      %v1826 = vsel %vm665, %v1789, 0
      %v1829 = vsel %vm665, %v1790, 0
      %v1832 = vsel %vm665, %v1791, 0
      %v1835 = vsel %vm665, %v1792, 0
      %v1838 = vsel %vm665, %v1793, 0
      %v1841 = vsel %vm665, %v1794, 0
      %v1844 = vsel %vm665, %v1795, 0
      %v1847 = vsel %vm665, %v1796, 0
      %v1850 = vsel %vm665, %v1797, 0
      %1852 = vmatpush.bf16.msra.mxu0 0
      %1853 = vmatpush.bf16.msra.mxu0 0
      %1854 = vmatpush.bf16.msra.mxu0 0
      %1855 = vmatpush.bf16.msra.mxu0 0
      %1856 = vmatpush.bf16.msra.mxu0 0
      %1857 = vmatpush.bf16.msra.mxu0 0
      %1858 = vmatpush.bf16.msra.mxu0 0
      %1859 = vmatpush.bf16.msra.mxu0 %v1802
      %1860 = vmatmul.bf16.gmra.mxu0 %v1805
      %v1861 = vpop.f32.mrf.mxu0
      %v1862 = vadd.f32 0.0, %v1861
      %v1863 = vpop.f32.mrf.mxu0
      %v1864 = vadd.f32 0.0, %v1863
      %1865 = vmatmul.bf16.gmra.mxu0 %v1808
      %v1866 = vpop.f32.mrf.mxu0
      %v1867 = vadd.f32 0.0, %v1866
      %v1868 = vpop.f32.mrf.mxu0
      %v1869 = vadd.f32 0.0, %v1868
      %1870 = vmatmul.bf16.gmra.mxu0 %v1811
      %v1871 = vpop.f32.mrf.mxu0
      %v1872 = vadd.f32 0.0, %v1871
      %v1873 = vpop.f32.mrf.mxu0
      %v1874 = vadd.f32 0.0, %v1873
      %1875 = vmatmul.bf16.gmra.mxu0 %v1814
      %v1876 = vpop.f32.mrf.mxu0
      %v1877 = vadd.f32 0.0, %v1876
      %v1878 = vpop.f32.mrf.mxu0
      %v1879 = vadd.f32 0.0, %v1878
      %1880 = vmatmul.bf16.gmra.mxu0 %v1817
      %v1881 = vpop.f32.mrf.mxu0
      %v1882 = vadd.f32 0.0, %v1881
      %v1883 = vpop.f32.mrf.mxu0
      %v1884 = vadd.f32 0.0, %v1883
      %1885 = vmatmul.bf16.gmra.mxu0 %v1820
      %v1886 = vpop.f32.mrf.mxu0
      %v1887 = vadd.f32 0.0, %v1886
      %v1888 = vpop.f32.mrf.mxu0
      %v1889 = vadd.f32 0.0, %v1888
      %1890 = vmatmul.bf16.gmra.mxu0 %v1823
      %v1891 = vpop.f32.mrf.mxu0
      %v1892 = vadd.f32 0.0, %v1891
      %v1893 = vpop.f32.mrf.mxu0
      %v1894 = vadd.f32 0.0, %v1893
      %1895 = vmatmul.bf16.gmra.mxu0 %v1826
      %v1896 = vpop.f32.mrf.mxu0
      %v1897 = vadd.f32 0.0, %v1896
      %v1898 = vpop.f32.mrf.mxu0
      %v1899 = vadd.f32 0.0, %v1898
      %1900 = vmatmul.bf16.gmra.mxu0 %v1829
      %v1901 = vpop.f32.mrf.mxu0
      %v1902 = vadd.f32 0.0, %v1901
      %v1903 = vpop.f32.mrf.mxu0
      %v1904 = vadd.f32 0.0, %v1903
      %1905 = vmatmul.bf16.gmra.mxu0 %v1832
      %v1906 = vpop.f32.mrf.mxu0
      %v1907 = vadd.f32 0.0, %v1906
      %v1908 = vpop.f32.mrf.mxu0
      %v1909 = vadd.f32 0.0, %v1908
      %1910 = vmatmul.bf16.gmra.mxu0 %v1835
      %v1911 = vpop.f32.mrf.mxu0
      %v1912 = vadd.f32 0.0, %v1911
      %v1913 = vpop.f32.mrf.mxu0
      %v1914 = vadd.f32 0.0, %v1913
      %1915 = vmatmul.bf16.gmra.mxu0 %v1838
      %v1916 = vpop.f32.mrf.mxu0
      %v1917 = vadd.f32 0.0, %v1916
      %v1918 = vpop.f32.mrf.mxu0
      %v1919 = vadd.f32 0.0, %v1918
      %1920 = vmatmul.bf16.gmra.mxu0 %v1841
      %v1921 = vpop.f32.mrf.mxu0
      %v1922 = vadd.f32 0.0, %v1921
      %v1923 = vpop.f32.mrf.mxu0
      %v1924 = vadd.f32 0.0, %v1923
      %1925 = vmatmul.bf16.gmra.mxu0 %v1844
      %v1926 = vpop.f32.mrf.mxu0
      %v1927 = vadd.f32 0.0, %v1926
      %v1928 = vpop.f32.mrf.mxu0
      %v1929 = vadd.f32 0.0, %v1928
      %1930 = vmatmul.bf16.gmra.mxu0 %v1847
      %v1931 = vpop.f32.mrf.mxu0
      %v1932 = vadd.f32 0.0, %v1931
      %v1933 = vpop.f32.mrf.mxu0
      %v1934 = vadd.f32 0.0, %v1933
      %1935 = vmatmul.bf16.gmra.mxu0 %v1850
      %v1936 = vpop.f32.mrf.mxu0
      %v1937 = vadd.f32 0.0, %v1936
      %v1938 = vpop.f32.mrf.mxu0
      %v1939 = vadd.f32 0.0, %v1938
      %1940 = vdwg.mxu0
      %v1941 = vadd.f32 %v1284, %v1862
      %v1942 = vadd.f32 %v1285, %v1864
      %v1943 = vadd.f32 %v1286, %v1867
      %v1944 = vadd.f32 %v1287, %v1869
      %v1945 = vadd.f32 %v1288, %v1872
      %v1946 = vadd.f32 %v1289, %v1874
      %v1947 = vadd.f32 %v1290, %v1877
      %v1948 = vadd.f32 %v1291, %v1879
      %v1949 = vadd.f32 %v1292, %v1882
      %v1950 = vadd.f32 %v1293, %v1884
      %v1951 = vadd.f32 %v1294, %v1887
      %v1952 = vadd.f32 %v1295, %v1889
      %v1953 = vadd.f32 %v1296, %v1892
      %v1954 = vadd.f32 %v1297, %v1894
      %v1955 = vadd.f32 %v1298, %v1897
      %v1956 = vadd.f32 %v1299, %v1899
      %v1957 = vadd.f32 %v1300, %v1902
      %v1958 = vadd.f32 %v1301, %v1904
      %v1959 = vadd.f32 %v1302, %v1907
      %v1960 = vadd.f32 %v1303, %v1909
      %v1961 = vadd.f32 %v1304, %v1912
      %v1962 = vadd.f32 %v1305, %v1914
      %v1963 = vadd.f32 %v1306, %v1917
      %v1964 = vadd.f32 %v1307, %v1919
      %v1965 = vadd.f32 %v1308, %v1922
      %v1966 = vadd.f32 %v1309, %v1924
      %v1967 = vadd.f32 %v1310, %v1927
      %v1968 = vadd.f32 %v1311, %v1929
      %v1969 = vadd.f32 %v1312, %v1932
      %v1970 = vadd.f32 %v1313, %v1934
      %v1971 = vadd.f32 %v1314, %v1937
      %v1972 = vadd.f32 %v1315, %v1939
      %v1973 = vld [vmem:[%s2] sm:$0x1]
      %v1975 = vperm.slane %v1973, 0
      %v1977 = vadd.f32 %v1941, %v1975
      %v1978 = vadd.f32 %v1942, %v1975
      %v1979 = vadd.f32 %v1943, %v1975
      %v1980 = vadd.f32 %v1944, %v1975
      %v1981 = vadd.f32 %v1945, %v1975
      %v1982 = vadd.f32 %v1946, %v1975
      %v1983 = vadd.f32 %v1947, %v1975
      %v1984 = vadd.f32 %v1948, %v1975
      %v1985 = vadd.f32 %v1949, %v1975
      %v1986 = vadd.f32 %v1950, %v1975
      %v1987 = vadd.f32 %v1951, %v1975
      %v1988 = vadd.f32 %v1952, %v1975
      %v1989 = vadd.f32 %v1953, %v1975
      %v1990 = vadd.f32 %v1954, %v1975
      %v1991 = vadd.f32 %v1955, %v1975
      %v1992 = vadd.f32 %v1956, %v1975
      %v1993 = vadd.f32 %v1957, %v1975
      %v1994 = vadd.f32 %v1958, %v1975
      %v1995 = vadd.f32 %v1959, %v1975
      %v1996 = vadd.f32 %v1960, %v1975
      %v1997 = vadd.f32 %v1961, %v1975
      %v1998 = vadd.f32 %v1962, %v1975
      %v1999 = vadd.f32 %v1963, %v1975
      %v2000 = vadd.f32 %v1964, %v1975
      %v2001 = vadd.f32 %v1965, %v1975
      %v2002 = vadd.f32 %v1966, %v1975
      %v2003 = vadd.f32 %v1967, %v1975
      %v2004 = vadd.f32 %v1968, %v1975
      %v2005 = vadd.f32 %v1969, %v1975
      %v2006 = vadd.f32 %v1970, %v1975
      %v2007 = vadd.f32 %v1971, %v1975
      %v2008 = vadd.f32 %v1972, %v1975
      %vm2009 = vcmask 64512
      %2010 = vst.msk [vmem:[%s170] sm:$0xff] %vm2009, %v1977
      %2011 = vst.msk [vmem:[%s170 + $0x8] sm:$0xff] %vm2009, %v1978
      %2012 = vst.msk [vmem:[%s170 + $0x10] sm:$0xff] %vm2009, %v1979
      %2013 = vst.msk [vmem:[%s170 + $0x18] sm:$0xff] %vm2009, %v1980
      %2014 = vst.msk [vmem:[%s170 + $0x20] sm:$0xff] %vm2009, %v1981
      %2015 = vst.msk [vmem:[%s170 + $0x28] sm:$0xff] %vm2009, %v1982
      %2016 = vst.msk [vmem:[%s170 + $0x30] sm:$0xff] %vm2009, %v1983
      %2017 = vst.msk [vmem:[%s170 + $0x38] sm:$0xff] %vm2009, %v1984
      %2018 = vst.msk [vmem:[%s170 + $0x40] sm:$0xff] %vm2009, %v1985
      %2019 = vst.msk [vmem:[%s170 + $0x48] sm:$0xff] %vm2009, %v1986
      %2020 = vst.msk [vmem:[%s170 + $0x50] sm:$0xff] %vm2009, %v1987
      %2021 = vst.msk [vmem:[%s170 + $0x58] sm:$0xff] %vm2009, %v1988
      %2022 = vst.msk [vmem:[%s170 + $0x60] sm:$0xff] %vm2009, %v1989
      %2023 = vst.msk [vmem:[%s170 + $0x68] sm:$0xff] %vm2009, %v1990
      %2024 = vst.msk [vmem:[%s170 + $0x70] sm:$0xff] %vm2009, %v1991
      %2025 = vst.msk [vmem:[%s170 + $0x78] sm:$0xff] %vm2009, %v1992
      %2026 = vst.msk [vmem:[%s170 + $0x80] sm:$0xff] %vm2009, %v1993
      %2027 = vst.msk [vmem:[%s170 + $0x88] sm:$0xff] %vm2009, %v1994
      %2028 = vst.msk [vmem:[%s170 + $0x90] sm:$0xff] %vm2009, %v1995
      %2029 = vst.msk [vmem:[%s170 + $0x98] sm:$0xff] %vm2009, %v1996
      %2030 = vst.msk [vmem:[%s170 + $0xa0] sm:$0xff] %vm2009, %v1997
      %2031 = vst.msk [vmem:[%s170 + $0xa8] sm:$0xff] %vm2009, %v1998
      %2032 = vst.msk [vmem:[%s170 + $0xb0] sm:$0xff] %vm2009, %v1999
      %2033 = vst.msk [vmem:[%s170 + $0xb8] sm:$0xff] %vm2009, %v2000
      %2034 = vst.msk [vmem:[%s170 + $0xc0] sm:$0xff] %vm2009, %v2001
      %2035 = vst.msk [vmem:[%s170 + $0xc8] sm:$0xff] %vm2009, %v2002
      %2036 = vst.msk [vmem:[%s170 + $0xd0] sm:$0xff] %vm2009, %v2003
      %2037 = vst.msk [vmem:[%s170 + $0xd8] sm:$0xff] %vm2009, %v2004
      %2038 = vst.msk [vmem:[%s170 + $0xe0] sm:$0xff] %vm2009, %v2005
      %2039 = vst.msk [vmem:[%s170 + $0xe8] sm:$0xff] %vm2009, %v2006
      %2040 = vst.msk [vmem:[%s170 + $0xf0] sm:$0xff] %vm2009, %v2007
      %2041 = vst.msk [vmem:[%s170 + $0xf8] sm:$0xff] %vm2009, %v2008
      %p2042 = scmp.lt.s32.totalorder %s14, 1
      %s2043 = scalar_select %p2042, %s14, 1
      %s2044 = smul.addr %s2043, 32
      %s2045 = smul.addr %s2044, 8
      %s2046 = scalar_lea.vmem %s3, %s2045
      // Predicated region
      $region33: #{_lambda_.1} parent=31 // pred_check
        %p2047 = pneg %p100
      $region34: #{_lambda_.1} parent=31 // pred_check_branch
        %2049 = sbr.rel (%p2047) target = $region36
      $region35: #{_lambda_.1} parent=31 // pred_region
        _
      $region36: #{_lambda_.1} parent=31 // pred_fallthru
        _
    $region32: #{_lambda_.1} parent=5 // pred_fallthru
      _
    %p2050 = scmp.le.s32.totalorder 2, %s9
    // Predicated region
    $region37: #{_lambda_.1} parent=5 // pred_check
      %p2051 = pneg %p2050
    $region38: #{_lambda_.1} parent=5 // pred_check_branch
      %2053 = sbr.rel (%p2051) target = $region40
    $region39: #{_lambda_.1} parent=5 // pred_region
      %s2054 = ssub.s32 %s9, 2
      // Predicated region
      $region41: #{_lambda_.1} parent=39 // pred_check
        %p2055 = pneg %p106
      $region42: #{_lambda_.1} parent=39 // pred_check_branch
        %2057 = sbr.rel (%p2055) target = $region44
      $region43: #{_lambda_.1} parent=39 // pred_region
        %p2058 = scmp.lt.s32.totalorder %s15, 1
        %s2059 = scalar_select %p2058, %s15, 1
        %s2060 = smul.addr %s2059, 32
        %s2061 = smul.addr %s2060, 8
        %s2062 = scalar_lea.vmem %s3, %s2061
      $region44: #{_lambda_.1} parent=39 // pred_fallthru
        _
    $region40: #{_lambda_.1} parent=5 // pred_fallthru
      _
  $region6: #{_lambda_.1} parent=0 // loop_footer
    %s13 = sadd.s32 1, %s9
  $region7: #{_lambda_.1} parent=0 // loop_footer_branch
    %8 = sbr.rel target = $region3
  $region8: #{_lambda_.1} parent=0 // loop_exit
    _

</llo_original>
